<compile_context>
chip_gen: v7x
topology: tpu7x:2x2x1
jax: 0.10.0
libtpu: 0.0.40
codegen_flags: <defaults>
</compile_context>

<pallas_src>
import math

import jax
import jax.numpy as jnp
from jax.experimental import pallas as pl
from jax.experimental.pallas import tpu as pltpu


def _make_pinn_kernel(num_layers, use_vpu_first, use_reduce_last, act_dtype):
    """Kernel ref order: x_ref, w0, b0, w1, b1, ..., w_{L-1}, b_{L-1}, out_ref."""

    def kernel(x_ref, *refs):
        out_ref = refs[-1]
        params = refs[:-1]

        a = x_ref[...].astype(jnp.float32)                 # (in_dim, tile)

        for i in range(num_layers):
            w = params[2 * i][...]
            b = params[2 * i + 1][...]
            is_last = i == num_layers - 1

            if i == 0 and use_vpu_first:
                # Tiny-K first layer on the VPU: sum of rank-1 products
                # (lane-broadcast weight column) * (sublane-broadcast x row).
                in_dim = w.shape[1]
                z = w[:, 0:1] * a[0:1, :]
                for k in range(1, in_dim):
                    z = z + w[:, k:k + 1] * a[k:k + 1, :]
                z = z + b
            elif is_last and use_reduce_last:
                # Final hidden->1 layer as a sublane (XLU) reduction; the
                # weight arrives pre-transposed as an f32 (hidden, 1) column.
                z = jnp.sum(w * a.astype(jnp.float32), axis=0,
                            keepdims=True) + b
            else:
                # Hidden layers: MXU matmul (bf16 inputs when hidden_bf16),
                # f32 accumulation, lane-dense N = tile_batch.
                z = jnp.dot(w, a.astype(w.dtype),
                            preferred_element_type=jnp.float32) + b

            # tanh in act_dtype (bf16 halves EUP pushes on v6e/v7x).  Padded
            # lane columns only ever see tanh(b) and are sliced off after.
            a = z if is_last else jnp.tanh(z.astype(act_dtype))

        out_ref[...] = a.astype(out_ref.dtype)

    return kernel


def _choose_tile_batch(n, cap, min_grid):
    """Biggest lane tile <= cap such that the grid has >= min_grid steps."""
    n128 = -(-n // 128) * 128
    tile = -(-n128 // max(1, min_grid))
    tile = -(-tile // 128) * 128
    return max(128, min(cap, tile))


def helmholtz_pinn_forward(x, lb, ub, weights, biases, *,
                           tile_batch=None, tile_batch_cap=8192,
                           min_grid=2, hidden_bf16=False,
                           x_is_transposed=False):
    """HelmholtzPINN forward pass as one fused Pallas TPU kernel.

    Args:
      x:       (N, in_dim) float collocation points (PyTorch layout), or
               (in_dim, N) if x_is_transposed=True (zero-copy fast path).
      lb, ub:  (1, in_dim) domain bounds; the (x-lb)/(ub-lb) scaling is folded
               into layer 0 on the host.
      weights: list of PyTorch-layout (out_dim, in_dim) matrices.
      biases:  list of (out_dim,) biases.
      tile_batch: lane-axis tile (multiple of 128); adaptive if None.
      tile_batch_cap / min_grid: bounds for the adaptive tile choice.
      hidden_bf16: run 32x32 hidden matmuls + tanh in bf16 (f32 accumulation).
                   Accuracy-gated; recommended on v6e/v7x only.
    Returns:
      (N, out_dim) float32 network output, matching the PyTorch forward().
    """
    in_dim = weights[0].shape[1]
    num_layers = len(weights)
    out_dim = weights[-1].shape[0]

    if x_is_transposed:
        assert x.shape[0] == in_dim
        N = x.shape[1]
    else:
        assert x.shape[1] == in_dim
        N = x.shape[0]

    if tile_batch is None:
        tile_batch = _choose_tile_batch(N, tile_batch_cap, min_grid)
    assert tile_batch % 128 == 0, "tile_batch must be a multiple of 128"

    n_tiles = -(-N // tile_batch)
    N_pad = n_tiles * tile_batch

    # ---- host-side prep (tiny, fuses under jit) ----------------------------
    # Fold (x - lb)/(ub - lb) into layer 0:
    #   W0' = W0 / (ub - lb)   (per input column)
    #   b0' = b0 - W0 @ (lb / (ub - lb)).T
    scale = 1.0 / (ub - lb)                                       # (1, in_dim)
    w0 = (weights[0] * scale).astype(jnp.float32)                 # (h0, in_dim)
    b0 = (biases[0].reshape(-1, 1)
          - weights[0].astype(jnp.float32)
          @ (lb * scale).reshape(-1, 1)).astype(jnp.float32)

    use_vpu_first = in_dim <= 4
    use_reduce_last = (out_dim == 1) and not (num_layers == 1 and use_vpu_first)

    hidden_dtype = jnp.bfloat16 if hidden_bf16 else jnp.float32

    ws, bs = [w0], [b0]
    for i in range(1, num_layers):
        keep_f32 = (i == num_layers - 1)      # last layer stays f32
        ws.append(weights[i].astype(jnp.float32 if keep_f32 else hidden_dtype))
        bs.append(biases[i].reshape(-1, 1).astype(jnp.float32))
    if use_reduce_last:
        ws[-1] = ws[-1].T.astype(jnp.float32)                     # (hidden, 1)

    # Input: points on the lane axis.  One fused cast+transpose+pad copy
    # (under jit); zero copies if the caller already passes (in_dim, N).
    if x_is_transposed:
        x_t = jnp.pad(x.astype(jnp.float32), ((0, 0), (0, N_pad - N)))
    else:
        x_t = jnp.pad(x.astype(jnp.float32).T, ((0, 0), (0, N_pad - N)))

    kernel = _make_pinn_kernel(num_layers, use_vpu_first, use_reduce_last,
                               hidden_dtype)

    # x / out stream along the lane (batch) axis; weights & biases are small
    # full-array blocks with constant index maps (fetched once, resident).
    in_specs = [pl.BlockSpec((in_dim, tile_batch), lambda i: (0, i))]
    for w, b in zip(ws, bs):
        in_specs.append(pl.BlockSpec(w.shape, lambda i: (0, 0)))
        in_specs.append(pl.BlockSpec(b.shape, lambda i: (0, 0)))

    out_spec = pl.BlockSpec((out_dim, tile_batch), lambda i: (0, i))

    fn = pl.pallas_call(
        kernel,
        out_shape=jax.ShapeDtypeStruct((out_dim, N_pad), jnp.float32),
        grid_spec=pl.GridSpec(
            grid=(n_tiles,),
            in_specs=in_specs,
            out_specs=out_spec,
        ),
        compiler_params=pltpu.CompilerParams(
            dimension_semantics=("parallel",),
            vmem_limit_bytes=32 * 1024 * 1024),
    )

    args = [x_t]
    for w, b in zip(ws, bs):
        args.append(w)
        args.append(b)
    out_t = fn(*args)                                    # (out_dim, N_pad)

    if out_dim == 1:
        # Lane-dense slab -> (N, 1) via a cheap slice, no transpose HBM pass.
        return out_t[0, :N][:, None]
    return out_t[:, :N].T


def init_params(layers, key):
    """Xavier-normal (gain=1) weights + zero biases in PyTorch layout
    (W: (fan_out, fan_in), b: (fan_out,)), matching the nn.Module init."""
    weights, biases = [], []
    for i in range(len(layers) - 1):
        fan_in, fan_out = layers[i], layers[i + 1]
        key, sub = jax.random.split(key)
        std = math.sqrt(2.0 / (fan_in + fan_out))
        w = std * jax.random.normal(sub, (fan_out, fan_in), dtype=jnp.float32)
        b = jnp.zeros((fan_out,), dtype=jnp.float32)
        weights.append(w)
        biases.append(b)
    return weights, biases


def reference_forward(x, lb, ub, weights, biases):
    """Pure-JAX reference of the PyTorch forward for the correctness check."""
    a = (x - lb) / (ub - lb)
    for i in range(len(weights) - 1):
        a = jnp.tanh(a @ weights[i].T + biases[i])
    return a @ weights[-1].T + biases[-1]


if __name__ == "__main__":
    # HelmholtzPINN: 2-D (x1, x2) collocation points -> scalar field u.
    layers = [2, 32, 32, 32, 1]
    N = 2048   # small example; adaptive tiling gives tile_batch=1024, grid=2

    key = jax.random.PRNGKey(0)
    key, kx = jax.random.split(key)

    # Points in the bounding box of the circular domain; lb/ub are the bounds
    # for the (x - lb)/(ub - lb) scaling (folded into layer 0 here).
    x = jax.random.uniform(kx, (N, 2), dtype=jnp.float32, minval=-1.0, maxval=1.0)
    lb = jnp.array([[-1.0, -1.0]], dtype=jnp.float32)
    ub = jnp.array([[1.0, 1.0]], dtype=jnp.float32)

    weights, biases = init_params(layers, key)

    # jit the wrapper so the input cast+transpose+pad collapses into a single
    # fused copy and prep + kernel + epilogue are one XLA program.
    fwd = jax.jit(lambda pts: helmholtz_pinn_forward(pts, lb, ub, weights, biases))
    out = jax.block_until_ready(fwd(x))

    ref = reference_forward(x, lb, ub, weights, biases)
    assert out.shape == (N, 1)
    assert jnp.allclose(out, ref, atol=3e-5, rtol=3e-5), "mismatch vs reference"

    # Optional accuracy-gated bf16 hidden path (EUP/byte win on v6e/v7x).
    fwd_bf16 = jax.jit(lambda pts: helmholtz_pinn_forward(
        pts, lb, ub, weights, biases, hidden_bf16=True))
    out_bf16 = jax.block_until_ready(fwd_bf16(x))
    assert out_bf16.shape == (N, 1)
    assert jnp.allclose(out_bf16, ref, atol=5e-2, rtol=5e-2), "bf16 path mismatch"

    # TODO(synk): loss_PDE (torch.autograd second derivatives + scipy Bessel jn)
    # and test() are host/training utilities, not part of the forward pass.

    print("KERNEL_OK")
</pallas_src>

<mosaic_0001>
module attributes {stable_mosaic.version = 11 : i64} {
  func.func @kernel(%arg0: i32, %arg1: memref<2x1024xf32, #tpu.memory_space<vmem>>, %arg2: memref<32x2xf32, #tpu.memory_space<vmem>>, %arg3: memref<32x1xf32, #tpu.memory_space<vmem>>, %arg4: memref<32x32xf32, #tpu.memory_space<vmem>>, %arg5: memref<32x1xf32, #tpu.memory_space<vmem>>, %arg6: memref<32x32xf32, #tpu.memory_space<vmem>>, %arg7: memref<32x1xf32, #tpu.memory_space<vmem>>, %arg8: memref<32x1xf32, #tpu.memory_space<vmem>>, %arg9: memref<1x1xf32, #tpu.memory_space<vmem>>, %arg10: memref<1x1024xf32, #tpu.memory_space<vmem>>) attributes {dimension_semantics = [#tpu.dimension_semantics<parallel>], iteration_bounds = array<i64: 2>, scalar_prefetch = 0 : i64, scratch_operands = 0 : i64, tpu.core_type = #tpu.core_type<tc>, window_params = [{transform_indices = @transform_0, window_bounds = array<i64: 2, 1024>}, {pipeline_mode = #tpu.pipeline_mode<synchronous>, transform_indices = @transform_1, window_bounds = array<i64: 32, 2>}, {pipeline_mode = #tpu.pipeline_mode<synchronous>, transform_indices = @transform_2, window_bounds = array<i64: 32, 1>}, {pipeline_mode = #tpu.pipeline_mode<synchronous>, transform_indices = @transform_3, window_bounds = array<i64: 32, 32>}, {pipeline_mode = #tpu.pipeline_mode<synchronous>, transform_indices = @transform_4, window_bounds = array<i64: 32, 1>}, {pipeline_mode = #tpu.pipeline_mode<synchronous>, transform_indices = @transform_5, window_bounds = array<i64: 32, 32>}, {pipeline_mode = #tpu.pipeline_mode<synchronous>, transform_indices = @transform_6, window_bounds = array<i64: 32, 1>}, {pipeline_mode = #tpu.pipeline_mode<synchronous>, transform_indices = @transform_7, window_bounds = array<i64: 32, 1>}, {pipeline_mode = #tpu.pipeline_mode<synchronous>, transform_indices = @transform_8, window_bounds = array<i64: 1, 1>}, {transform_indices = @transform_9, window_bounds = array<i64: 1, 1024>}]} {
    %c0 = arith.constant 0 : index
    %c0_0 = arith.constant 0 : index
    %0 = vector.load %arg1[%c0, %c0_0] : memref<2x1024xf32, #tpu.memory_space<vmem>>, vector<2x1024xf32>
    %c0_1 = arith.constant 0 : index
    %c0_2 = arith.constant 0 : index
    %1 = vector.load %arg2[%c0_1, %c0_2] : memref<32x2xf32, #tpu.memory_space<vmem>>, vector<32x2xf32>
    %c0_3 = arith.constant 0 : index
    %c0_4 = arith.constant 0 : index
    %2 = vector.load %arg3[%c0_3, %c0_4] : memref<32x1xf32, #tpu.memory_space<vmem>>, vector<32x1xf32>
    %3 = vector.extract_strided_slice %1 {offsets = [0, 0], sizes = [32, 1], strides = [1, 1]} : vector<32x2xf32> to vector<32x1xf32>
    %4 = vector.extract_strided_slice %0 {offsets = [0, 0], sizes = [1, 1024], strides = [1, 1]} : vector<2x1024xf32> to vector<1x1024xf32>
    %5 = vector.broadcast %3 : vector<32x1xf32> to vector<32x1024xf32>
    %6 = vector.broadcast %4 : vector<1x1024xf32> to vector<32x1024xf32>
    %7 = arith.mulf %5, %6 : vector<32x1024xf32>
    %8 = vector.extract_strided_slice %1 {offsets = [0, 1], sizes = [32, 1], strides = [1, 1]} : vector<32x2xf32> to vector<32x1xf32>
    %9 = vector.extract_strided_slice %0 {offsets = [1, 0], sizes = [1, 1024], strides = [1, 1]} : vector<2x1024xf32> to vector<1x1024xf32>
    %10 = vector.broadcast %8 : vector<32x1xf32> to vector<32x1024xf32>
    %11 = vector.broadcast %9 : vector<1x1024xf32> to vector<32x1024xf32>
    %12 = arith.mulf %10, %11 : vector<32x1024xf32>
    %13 = arith.addf %7, %12 : vector<32x1024xf32>
    %14 = vector.broadcast %2 : vector<32x1xf32> to vector<32x1024xf32>
    %15 = arith.addf %13, %14 : vector<32x1024xf32>
    %16 = math.tanh %15 : vector<32x1024xf32>
    %c0_5 = arith.constant 0 : index
    %c0_6 = arith.constant 0 : index
    %17 = vector.load %arg4[%c0_5, %c0_6] : memref<32x32xf32, #tpu.memory_space<vmem>>, vector<32x32xf32>
    %c0_7 = arith.constant 0 : index
    %c0_8 = arith.constant 0 : index
    %18 = vector.load %arg5[%c0_7, %c0_8] : memref<32x1xf32, #tpu.memory_space<vmem>>, vector<32x1xf32>
    %cst = arith.constant dense<0.000000e+00> : vector<32x1024xf32>
    %19 = tpu.matmul %17, %16, %cst {dimension_numbers = #tpu.dot_dimension_numbers<[1], [0], [0], [1], [0, 0, 1, 1], [], []>} : vector<32x32xf32>, vector<32x1024xf32>, vector<32x1024xf32> -> vector<32x1024xf32>
    %20 = vector.broadcast %18 : vector<32x1xf32> to vector<32x1024xf32>
    %21 = arith.addf %19, %20 : vector<32x1024xf32>
    %22 = math.tanh %21 : vector<32x1024xf32>
    %c0_9 = arith.constant 0 : index
    %c0_10 = arith.constant 0 : index
    %23 = vector.load %arg6[%c0_9, %c0_10] : memref<32x32xf32, #tpu.memory_space<vmem>>, vector<32x32xf32>
    %c0_11 = arith.constant 0 : index
    %c0_12 = arith.constant 0 : index
    %24 = vector.load %arg7[%c0_11, %c0_12] : memref<32x1xf32, #tpu.memory_space<vmem>>, vector<32x1xf32>
    %cst_13 = arith.constant dense<0.000000e+00> : vector<32x1024xf32>
    %25 = tpu.matmul %23, %22, %cst_13 {dimension_numbers = #tpu.dot_dimension_numbers<[1], [0], [0], [1], [0, 0, 1, 1], [], []>} : vector<32x32xf32>, vector<32x1024xf32>, vector<32x1024xf32> -> vector<32x1024xf32>
    %26 = vector.broadcast %24 : vector<32x1xf32> to vector<32x1024xf32>
    %27 = arith.addf %25, %26 : vector<32x1024xf32>
    %28 = math.tanh %27 : vector<32x1024xf32>
    %c0_14 = arith.constant 0 : index
    %c0_15 = arith.constant 0 : index
    %29 = vector.load %arg8[%c0_14, %c0_15] : memref<32x1xf32, #tpu.memory_space<vmem>>, vector<32x1xf32>
    %c0_16 = arith.constant 0 : index
    %c0_17 = arith.constant 0 : index
    %30 = vector.load %arg9[%c0_16, %c0_17] : memref<1x1xf32, #tpu.memory_space<vmem>>, vector<1x1xf32>
    %31 = vector.broadcast %29 : vector<32x1xf32> to vector<32x1024xf32>
    %32 = arith.mulf %31, %28 : vector<32x1024xf32>
    %cst_18 = arith.constant dense<0.000000e+00> : vector<1024xf32>
    %33 = vector.multi_reduction <add>, %32, %cst_18 [0] : vector<32x1024xf32> to vector<1024xf32>
    %34 = vector.shape_cast %33 : vector<1024xf32> to vector<1x1024xf32>
    %35 = vector.broadcast %30 : vector<1x1xf32> to vector<1x1024xf32>
    %36 = arith.addf %34, %35 : vector<1x1024xf32>
    %c0_19 = arith.constant 0 : index
    %c0_20 = arith.constant 0 : index
    %37 = vector.load %arg10[%c0_19, %c0_20] : memref<1x1024xf32, #tpu.memory_space<vmem>>, vector<1x1024xf32>
    tpu.vector_store %arg10[%c0_19, %c0_20], %36 {strides = array<i32>} : memref<1x1024xf32, #tpu.memory_space<vmem>>, vector<1x1024xf32>,
    return
  }
  func.func @transform_0(%arg0: i32) -> (i32, i32) {
    %c0_i32 = arith.constant 0 : i32
    %c0_i32_0 = arith.constant 0 : i32
    return %c0_i32, %arg0 : i32, i32
  }
  func.func @transform_1(%arg0: i32) -> (i32, i32) {
    %c0_i32 = arith.constant 0 : i32
    %c0_i32_0 = arith.constant 0 : i32
    %c0_i32_1 = arith.constant 0 : i32
    return %c0_i32, %c0_i32_0 : i32, i32
  }
  func.func @transform_2(%arg0: i32) -> (i32, i32) {
    %c0_i32 = arith.constant 0 : i32
    %c0_i32_0 = arith.constant 0 : i32
    %c0_i32_1 = arith.constant 0 : i32
    return %c0_i32, %c0_i32_0 : i32, i32
  }
  func.func @transform_3(%arg0: i32) -> (i32, i32) {
    %c0_i32 = arith.constant 0 : i32
    %c0_i32_0 = arith.constant 0 : i32
    %c0_i32_1 = arith.constant 0 : i32
    return %c0_i32, %c0_i32_0 : i32, i32
  }
  func.func @transform_4(%arg0: i32) -> (i32, i32) {
    %c0_i32 = arith.constant 0 : i32
    %c0_i32_0 = arith.constant 0 : i32
    %c0_i32_1 = arith.constant 0 : i32
    return %c0_i32, %c0_i32_0 : i32, i32
  }
  func.func @transform_5(%arg0: i32) -> (i32, i32) {
    %c0_i32 = arith.constant 0 : i32
    %c0_i32_0 = arith.constant 0 : i32
    %c0_i32_1 = arith.constant 0 : i32
    return %c0_i32, %c0_i32_0 : i32, i32
  }
  func.func @transform_6(%arg0: i32) -> (i32, i32) {
    %c0_i32 = arith.constant 0 : i32
    %c0_i32_0 = arith.constant 0 : i32
    %c0_i32_1 = arith.constant 0 : i32
    return %c0_i32, %c0_i32_0 : i32, i32
  }
  func.func @transform_7(%arg0: i32) -> (i32, i32) {
    %c0_i32 = arith.constant 0 : i32
    %c0_i32_0 = arith.constant 0 : i32
    %c0_i32_1 = arith.constant 0 : i32
    return %c0_i32, %c0_i32_0 : i32, i32
  }
  func.func @transform_8(%arg0: i32) -> (i32, i32) {
    %c0_i32 = arith.constant 0 : i32
    %c0_i32_0 = arith.constant 0 : i32
    %c0_i32_1 = arith.constant 0 : i32
    return %c0_i32, %c0_i32_0 : i32, i32
  }
  func.func @transform_9(%arg0: i32) -> (i32, i32) {
    %c0_i32 = arith.constant 0 : i32
    %c0_i32_0 = arith.constant 0 : i32
    return %c0_i32, %arg0 : i32, i32
  }
}

</mosaic_0001>

<llo_original>
// kernel: _lambda_.1
$region0: #{_lambda_.1}
  #allocation0 [shape = 'u32[]', space=smem, size = 0x4, offset = 0x4, fixed_abs, tag = 'smem constant byte address 0x4 - core index']
  #allocation1 [shape = 'u32[144,128]{1,0:T(1,128)}', space=vmem, size = 0x12000, scoped, tag = 'internal scratch']
  #allocation2 [shape = 'f32[1,1]{1,0:T(1,128)S(1)}', space=vmem, size = 0x200, scoped, tag = 'scoped memory for _lambda_.1']
  %s0 = inlined_call_operand.vmem [shape: f32[2,2048], index: 0, kind: input, shape index: {}]
  %s1 = inlined_call_operand.hbm [shape: f32[32,2], index: 1, kind: input, shape index: {}]
  %s2 = inlined_call_operand.hbm [shape: f32[32,1], index: 2, kind: input, shape index: {}]
  %s3 = inlined_call_operand.hbm [shape: f32[32,32], index: 3, kind: input, shape index: {}]
  %s4 = inlined_call_operand.vmem [shape: f32[32,1], index: 4, kind: input, shape index: {}, may-alias: {4,6}]
  %s5 = inlined_call_operand.hbm [shape: f32[32,32], index: 5, kind: input, shape index: {}]
  %s6 = inlined_call_operand.vmem [shape: f32[32,1], index: 6, kind: input, shape index: {}, may-alias: {4,6}]
  %s7 = inlined_call_operand.hbm [shape: f32[32,1], index: 7, kind: input, shape index: {}]
  %s8 = inlined_call_operand.<no memory space> [shape: f32[1,1], index: 8, kind: input, shape index: {}]
  %s9 = inlined_call_operand.hbm [shape: f32[1,2048], index: 9, kind: output, shape index: {}]
  %s10 = sld [smem:[#allocation0]]
  $region89: #{_lambda_.1} parent=0
    _
  %s12 = ssub.s32 1, %s10
  %s13 = scalar_select 0, %s12, %s10
  %v14 = vstv %s8
  %15 = vst [vmem:[#allocation2] sm:$0x1] %v14
  $region1: #{_lambda_.1} parent=0
    #allocation3 [shape = 'u8[16384]{0}', space=vmem, size = 0x4000, scoped, tag = 'input window, operand 1, single buffered']
    #allocation4 [shape = 's32[2]{0}', space=sflag, size = 0x8, scoped, tag = 'scoped memory for _lambda_.1']
    #allocation5 [shape = 's32[2]{0}', space=sflag, size = 0x8, scoped, tag = 'scoped memory for _lambda_.1']
    #allocation6 [shape = 'u8[16384]{0}', space=vmem, size = 0x4000, scoped, tag = 'input window, operand 2, single buffered']
    #allocation7 [shape = 's32[1]{0}', space=sflag, size = 0x4, scoped, tag = 'scoped memory for _lambda_.1']
    #allocation8 [shape = 'u8[16384]{0}', space=vmem, size = 0x4000, scoped, tag = 'input window, operand 3, single buffered']
    #allocation9 [shape = 'u8[16384]{0}', space=vmem, size = 0x4000, scoped, tag = 'input window, operand 5, single buffered']
    #allocation10 [shape = 's32[1]{0}', space=sflag, size = 0x4, scoped, tag = 'scoped memory for _lambda_.1']
    #allocation11 [shape = 'u8[16384]{0}', space=vmem, size = 0x4000, scoped, tag = 'input window, operand 7, single buffered']
    #allocation12 [shape = 'u8[8192]{0}', space=vmem, size = 0x2000, scoped, tag = 'output window, operand 0']
    %16 = vsyncpa [#allocation4], 0
    %17 = vsyncpa [#allocation7], 0
    %18 = vsyncpa [#allocation10], 0
    %19 = vsyncpa [#allocation5], 0
    %s20 = scalar_lea.sflag [#allocation5], 1
    %21 = vsyncpa %s20, 0
    loop: start=0, step=1, limit=4
    $region2: #{_lambda_.1} parent=1 // loop_pre_header
      _
    $region3: #{_lambda_.1} parent=1 // loop_header
      %s23 = sphi 0, %s27
      %p24 = scmp.ge.s32.totalorder %s23, 4
      %s33 = sphi 0, %s35
      %s36 = sphi 0, %s33
      %s37 = sphi 0, %s36
      %s53 = sphi 0, %s37
      %s57 = sphi 0, %s57
      %s59 = sphi 0, %s57
      %s60 = sphi 0, %s59
      %s74 = sphi 0, %s60
      %s78 = sphi 0, %s78
      %s80 = sphi 0, %s78
      %s81 = sphi 0, %s80
      %s95 = sphi 0, %s81
      %s99 = sphi 0, %s99
      %s101 = sphi 0, %s99
      %s102 = sphi 0, %s101
      %s116 = sphi 0, %s102
      %s120 = sphi 0, %s120
      %s122 = sphi 0, %s120
      %s123 = sphi 0, %s122
      %s137 = sphi 0, %s123
      %s141 = sphi 0, %s141
      %s143 = sphi 0, %s141
      %s144 = sphi 0, %s143
      %s158 = sphi 0, %s144
      %s162 = sphi 0, %s162
      %s164 = sphi 0, %s162
      %s165 = sphi 0, %s164
      %s179 = sphi 0, %s165
      %s183 = sphi 0, %s183
      %s185 = sphi 0, %s183
      %s186 = sphi 0, %s185
      %s200 = sphi 0, %s186
      %s204 = sphi 0, %s204
      %s206 = sphi 0, %s204
      %s207 = sphi 0, %s206
      %s221 = sphi 0, %s207
      %s227 = sphi 0, %s229
      %s230 = sphi 0, %s227
      %s231 = sphi 0, %s230
      %s247 = sphi 0, %s231
    $region4: #{_lambda_.1} parent=1 // loop_header_branch
      %26 = sbr.rel (%p24) target = $region8
    $region5: #{_lambda_.1} parent=1 // loop_body
      %s28 = ssub.s32 %s23, 1
      %s29 = ssub.s32 %s23, 2
      %s30 = sadd.s32 %s23, 1
      %s31 = ssub.s32 %s23, %s30
      %p32 = scmp.eq.s32.totalorder %s31, 0
      %s34 = sadd.s32 %s33, 1
      %s35 = scalar_select %p32, %s33, %s34
      %p38 = pneg %p32
      %p39 = scmp.eq.s32.totalorder %s23, 1
      %p40 = por %p38, %p39
      %p41 = scmp.ne.s32.totalorder %s33, %s36
      %p42 = scmp.eq.s32.totalorder %s23, 0
      %p43 = por %p41, %p42
      %p44 = scmp.ne.s32.totalorder %s33, %s36
      %p45 = scmp.eq.s32.totalorder %s28, 1
      %p46 = por %p44, %p45
      %p47 = scmp.ne.s32.totalorder %s36, %s37
      %p48 = scmp.eq.s32.totalorder %s28, 0
      %p49 = por %p47, %p48
      %p50 = scmp.ne.s32.totalorder %s36, %s37
      %p51 = scmp.eq.s32.totalorder %s29, 1
      %p52 = por %p50, %p51
      %p54 = scmp.ne.s32.totalorder %s37, %s53
      %p55 = scmp.eq.s32.totalorder %s29, 0
      %p56 = por %p54, %p55
      %s58 = sadd.s32 %s57, 1
      %p61 = scmp.eq.s32.totalorder %s23, 1
      %p62 = scmp.ne.s32.totalorder %s57, %s59
      %p63 = scmp.eq.s32.totalorder %s23, 0
      %p64 = por %p62, %p63
      %p65 = scmp.ne.s32.totalorder %s57, %s59
      %p66 = scmp.eq.s32.totalorder %s28, 1
      %p67 = por %p65, %p66
      %p68 = scmp.ne.s32.totalorder %s59, %s60
      %p69 = scmp.eq.s32.totalorder %s28, 0
      %p70 = por %p68, %p69
      %p71 = scmp.ne.s32.totalorder %s59, %s60
      %p72 = scmp.eq.s32.totalorder %s29, 1
      %p73 = por %p71, %p72
      %p75 = scmp.ne.s32.totalorder %s60, %s74
      %p76 = scmp.eq.s32.totalorder %s29, 0
      %p77 = por %p75, %p76
      %s79 = sadd.s32 %s78, 1
      %p82 = scmp.eq.s32.totalorder %s23, 1
      %p83 = scmp.ne.s32.totalorder %s78, %s80
      %p84 = scmp.eq.s32.totalorder %s23, 0
      %p85 = por %p83, %p84
      %p86 = scmp.ne.s32.totalorder %s78, %s80
      %p87 = scmp.eq.s32.totalorder %s28, 1
      %p88 = por %p86, %p87
      %p89 = scmp.ne.s32.totalorder %s80, %s81
      %p90 = scmp.eq.s32.totalorder %s28, 0
      %p91 = por %p89, %p90
      %p92 = scmp.ne.s32.totalorder %s80, %s81
      %p93 = scmp.eq.s32.totalorder %s29, 1
      %p94 = por %p92, %p93
      %p96 = scmp.ne.s32.totalorder %s81, %s95
      %p97 = scmp.eq.s32.totalorder %s29, 0
      %p98 = por %p96, %p97
      %s100 = sadd.s32 %s99, 1
      %p103 = scmp.eq.s32.totalorder %s23, 1
      %p104 = scmp.ne.s32.totalorder %s99, %s101
      %p105 = scmp.eq.s32.totalorder %s23, 0
      %p106 = por %p104, %p105
      %p107 = scmp.ne.s32.totalorder %s99, %s101
      %p108 = scmp.eq.s32.totalorder %s28, 1
      %p109 = por %p107, %p108
      %p110 = scmp.ne.s32.totalorder %s101, %s102
      %p111 = scmp.eq.s32.totalorder %s28, 0
      %p112 = por %p110, %p111
      %p113 = scmp.ne.s32.totalorder %s101, %s102
      %p114 = scmp.eq.s32.totalorder %s29, 1
      %p115 = por %p113, %p114
      %p117 = scmp.ne.s32.totalorder %s102, %s116
      %p118 = scmp.eq.s32.totalorder %s29, 0
      %p119 = por %p117, %p118
      %s121 = sadd.s32 %s120, 1
      %p124 = scmp.eq.s32.totalorder %s23, 1
      %p125 = scmp.ne.s32.totalorder %s120, %s122
      %p126 = scmp.eq.s32.totalorder %s23, 0
      %p127 = por %p125, %p126
      %p128 = scmp.ne.s32.totalorder %s120, %s122
      %p129 = scmp.eq.s32.totalorder %s28, 1
      %p130 = por %p128, %p129
      %p131 = scmp.ne.s32.totalorder %s122, %s123
      %p132 = scmp.eq.s32.totalorder %s28, 0
      %p133 = por %p131, %p132
      %p134 = scmp.ne.s32.totalorder %s122, %s123
      %p135 = scmp.eq.s32.totalorder %s29, 1
      %p136 = por %p134, %p135
      %p138 = scmp.ne.s32.totalorder %s123, %s137
      %p139 = scmp.eq.s32.totalorder %s29, 0
      %p140 = por %p138, %p139
      %s142 = sadd.s32 %s141, 1
      %p145 = scmp.eq.s32.totalorder %s23, 1
      %p146 = scmp.ne.s32.totalorder %s141, %s143
      %p147 = scmp.eq.s32.totalorder %s23, 0
      %p148 = por %p146, %p147
      %p149 = scmp.ne.s32.totalorder %s141, %s143
      %p150 = scmp.eq.s32.totalorder %s28, 1
      %p151 = por %p149, %p150
      %p152 = scmp.ne.s32.totalorder %s143, %s144
      %p153 = scmp.eq.s32.totalorder %s28, 0
      %p154 = por %p152, %p153
      %p155 = scmp.ne.s32.totalorder %s143, %s144
      %p156 = scmp.eq.s32.totalorder %s29, 1
      %p157 = por %p155, %p156
      %p159 = scmp.ne.s32.totalorder %s144, %s158
      %p160 = scmp.eq.s32.totalorder %s29, 0
      %p161 = por %p159, %p160
      %s163 = sadd.s32 %s162, 1
      %p166 = scmp.eq.s32.totalorder %s23, 1
      %p167 = scmp.ne.s32.totalorder %s162, %s164
      %p168 = scmp.eq.s32.totalorder %s23, 0
      %p169 = por %p167, %p168
      %p170 = scmp.ne.s32.totalorder %s162, %s164
      %p171 = scmp.eq.s32.totalorder %s28, 1
      %p172 = por %p170, %p171
      %p173 = scmp.ne.s32.totalorder %s164, %s165
      %p174 = scmp.eq.s32.totalorder %s28, 0
      %p175 = por %p173, %p174
      %p176 = scmp.ne.s32.totalorder %s164, %s165
      %p177 = scmp.eq.s32.totalorder %s29, 1
      %p178 = por %p176, %p177
      %p180 = scmp.ne.s32.totalorder %s165, %s179
      %p181 = scmp.eq.s32.totalorder %s29, 0
      %p182 = por %p180, %p181
      %s184 = sadd.s32 %s183, 1
      %p187 = scmp.eq.s32.totalorder %s23, 1
      %p188 = scmp.ne.s32.totalorder %s183, %s185
      %p189 = scmp.eq.s32.totalorder %s23, 0
      %p190 = por %p188, %p189
      %p191 = scmp.ne.s32.totalorder %s183, %s185
      %p192 = scmp.eq.s32.totalorder %s28, 1
      %p193 = por %p191, %p192
      %p194 = scmp.ne.s32.totalorder %s185, %s186
      %p195 = scmp.eq.s32.totalorder %s28, 0
      %p196 = por %p194, %p195
      %p197 = scmp.ne.s32.totalorder %s185, %s186
      %p198 = scmp.eq.s32.totalorder %s29, 1
      %p199 = por %p197, %p198
      %p201 = scmp.ne.s32.totalorder %s186, %s200
      %p202 = scmp.eq.s32.totalorder %s29, 0
      %p203 = por %p201, %p202
      %s205 = sadd.s32 %s204, 1
      %p208 = scmp.eq.s32.totalorder %s23, 1
      %p209 = scmp.ne.s32.totalorder %s204, %s206
      %p210 = scmp.eq.s32.totalorder %s23, 0
      %p211 = por %p209, %p210
      %p212 = scmp.ne.s32.totalorder %s204, %s206
      %p213 = scmp.eq.s32.totalorder %s28, 1
      %p214 = por %p212, %p213
      %p215 = scmp.ne.s32.totalorder %s206, %s207
      %p216 = scmp.eq.s32.totalorder %s28, 0
      %p217 = por %p215, %p216
      %p218 = scmp.ne.s32.totalorder %s206, %s207
      %p219 = scmp.eq.s32.totalorder %s29, 1
      %p220 = por %p218, %p219
      %p222 = scmp.ne.s32.totalorder %s207, %s221
      %p223 = scmp.eq.s32.totalorder %s29, 0
      %p224 = por %p222, %p223
      %s225 = ssub.s32 %s23, %s30
      %p226 = scmp.eq.s32.totalorder %s225, 0
      %s228 = sadd.s32 %s227, 1
      %s229 = scalar_select %p226, %s227, %s228
      %p232 = pneg %p226
      %p233 = scmp.eq.s32.totalorder %s23, 1
      %p234 = por %p232, %p233
      %p235 = scmp.ne.s32.totalorder %s227, %s230
      %p236 = scmp.eq.s32.totalorder %s23, 0
      %p237 = por %p235, %p236
      %p238 = scmp.ne.s32.totalorder %s227, %s230
      %p239 = scmp.eq.s32.totalorder %s28, 1
      %p240 = por %p238, %p239
      %p241 = scmp.ne.s32.totalorder %s230, %s231
      %p242 = scmp.eq.s32.totalorder %s28, 0
      %p243 = por %p241, %p242
      %p244 = scmp.ne.s32.totalorder %s230, %s231
      %p245 = scmp.eq.s32.totalorder %s29, 1
      %p246 = por %p244, %p245
      %p248 = scmp.ne.s32.totalorder %s231, %s247
      %p249 = scmp.eq.s32.totalorder %s29, 0
      %p250 = por %p248, %p249
      %p251 = scmp.le.s32.totalorder 1, %s23
      %p252 = scmp.lt.s32.totalorder %s23, 3
      %p253 = pnand %p251, %p252
      %p254 = pneg %p253
      // Predicated region
      $region9: #{_lambda_.1} parent=5 // pred_check
        _
      $region10: #{_lambda_.1} parent=5 // pred_check_branch
        %256 = sbr.rel (%p253) target = $region12
      $region11: #{_lambda_.1} parent=5 // pred_region
        %s257 = ssub.s32 %s23, 1
        // Predicated region
        $region13: #{_lambda_.1} parent=11 // pred_check
          %p258 = pneg %p70
        $region14: #{_lambda_.1} parent=11 // pred_check_branch
          %260 = sbr.rel (%p258) target = $region16
        $region15: #{_lambda_.1} parent=11 // pred_region
          %s262 = ssub.s32 512, 512
          %263 = vsyncadd [#allocation4], %s262
          %s264 = sshll.u32 [#allocation3], 4
          %s265 = int_to_ptr.vmem [resolvable:$true] %s264
          %270 = dma.hbm_to_vmem [thread:$0]  %s1, 512, %s265, [#allocation4], 128, 128, 8
        $region16: #{_lambda_.1} parent=11 // pred_fallthru
          _
        // Predicated region
        $region17: #{_lambda_.1} parent=11 // pred_check
          %p271 = pneg %p91
        $region18: #{_lambda_.1} parent=11 // pred_check_branch
          %273 = sbr.rel (%p271) target = $region20
        $region19: #{_lambda_.1} parent=11 // pred_region
          %s275 = ssub.s32 512, 512
          %276 = vsyncadd [#allocation7], %s275
          %s277 = sshll.u32 [#allocation6], 4
          %s278 = int_to_ptr.vmem [resolvable:$true] %s277
          %283 = dma.hbm_to_vmem [thread:$0]  %s2, 512, %s278, [#allocation7], 128, 128, 8
        $region20: #{_lambda_.1} parent=11 // pred_fallthru
          _
        // Predicated region
        $region21: #{_lambda_.1} parent=11 // pred_check
          %p284 = pneg %p112
        $region22: #{_lambda_.1} parent=11 // pred_check_branch
          %286 = sbr.rel (%p284) target = $region24
        $region23: #{_lambda_.1} parent=11 // pred_region
          %s288 = ssub.s32 512, 512
          %289 = vsyncadd [#allocation7], %s288
          %s290 = sshll.u32 [#allocation8], 4
          %s291 = int_to_ptr.vmem [resolvable:$true] %s290
          %296 = dma.hbm_to_vmem [thread:$0]  %s3, 512, %s291, [#allocation7], 128, 128, 8
        $region24: #{_lambda_.1} parent=11 // pred_fallthru
          _
        // Predicated region
        $region25: #{_lambda_.1} parent=11 // pred_check
          %p297 = pneg %p133
        $region26: #{_lambda_.1} parent=11 // pred_check_branch
          %299 = sbr.rel (%p297) target = $region28
        $region27: #{_lambda_.1} parent=11 // pred_region
          _
        $region28: #{_lambda_.1} parent=11 // pred_fallthru
          _
        // Predicated region
        $region29: #{_lambda_.1} parent=11 // pred_check
          %p300 = pneg %p154
        $region30: #{_lambda_.1} parent=11 // pred_check_branch
          %302 = sbr.rel (%p300) target = $region32
        $region31: #{_lambda_.1} parent=11 // pred_region
          %s304 = ssub.s32 512, 512
          %305 = vsyncadd [#allocation10], %s304
          %s306 = sshll.u32 [#allocation9], 4
          %s307 = int_to_ptr.vmem [resolvable:$true] %s306
          %312 = dma.hbm_to_vmem [thread:$0]  %s5, 512, %s307, [#allocation10], 128, 128, 8
        $region32: #{_lambda_.1} parent=11 // pred_fallthru
          _
        // Predicated region
        $region33: #{_lambda_.1} parent=11 // pred_check
          %p313 = pneg %p175
        $region34: #{_lambda_.1} parent=11 // pred_check_branch
          %315 = sbr.rel (%p313) target = $region36
        $region35: #{_lambda_.1} parent=11 // pred_region
          _
        $region36: #{_lambda_.1} parent=11 // pred_fallthru
          _
        // Predicated region
        $region37: #{_lambda_.1} parent=11 // pred_check
          %p316 = pneg %p196
        $region38: #{_lambda_.1} parent=11 // pred_check_branch
          %318 = sbr.rel (%p316) target = $region40
        $region39: #{_lambda_.1} parent=11 // pred_region
          %s320 = ssub.s32 512, 512
          %321 = vsyncadd [#allocation10], %s320
          %s322 = sshll.u32 [#allocation11], 4
          %s323 = int_to_ptr.vmem [resolvable:$true] %s322
          %328 = dma.hbm_to_vmem [thread:$0]  %s7, 512, %s323, [#allocation10], 128, 128, 8
        $region40: #{_lambda_.1} parent=11 // pred_fallthru
          _
        // Predicated region
        $region41: #{_lambda_.1} parent=11 // pred_check
          %p329 = pneg %p217
        $region42: #{_lambda_.1} parent=11 // pred_check_branch
          %331 = sbr.rel (%p329) target = $region44
        $region43: #{_lambda_.1} parent=11 // pred_region
          _
        $region44: #{_lambda_.1} parent=11 // pred_fallthru
          _
      $region12: #{_lambda_.1} parent=5 // pred_fallthru
        _
      %p332 = scmp.lt.s32.totalorder %s23, 2
      // Predicated region
      $region45: #{_lambda_.1} parent=5 // pred_check
        %p333 = pneg %p332
      $region46: #{_lambda_.1} parent=5 // pred_check_branch
        %335 = sbr.rel (%p333) target = $region48
      $region47: #{_lambda_.1} parent=5 // pred_region
        // Predicated region
        $region49: #{_lambda_.1} parent=47 // pred_check
          %p336 = pneg %p43
        $region50: #{_lambda_.1} parent=47 // pred_check_branch
          %338 = sbr.rel (%p336) target = $region52
        $region51: #{_lambda_.1} parent=47 // pred_region
          %s339 = smul.u32 8, %s23
          %p340 = scmp.lt.s32.totalorder %s339, 15
          %s341 = scalar_select %p340, %s339, 15
          %s342 = smul.addr %s341, 2
          %s343 = scalar_lea.vmem %s0, %s342
          %s344 = smul.u32 8, %s23
        $region52: #{_lambda_.1} parent=47 // pred_fallthru
          _
      $region48: #{_lambda_.1} parent=5 // pred_fallthru
        _
      %p345 = scmp.le.s32.totalorder 1, %s23
      %p346 = scmp.lt.s32.totalorder %s23, 3
      %p347 = pnand %p345, %p346
      %p348 = pneg %p347
      // Predicated region
      $region53: #{_lambda_.1} parent=5 // pred_check
        _
      $region54: #{_lambda_.1} parent=5 // pred_check_branch
        %350 = sbr.rel (%p347) target = $region56
      $region55: #{_lambda_.1} parent=5 // pred_region
        %s351 = ssub.s32 %s23, 1
        // Predicated region
        $region57: #{_lambda_.1} parent=55 // pred_check
          %p352 = pneg %p70
        $region58: #{_lambda_.1} parent=55 // pred_check_branch
          %354 = sbr.rel (%p352) target = $region60
        $region59: #{_lambda_.1} parent=55 // pred_region
          %355 = dma.done [#allocation4], 512
        $region60: #{_lambda_.1} parent=55 // pred_fallthru
          _
        // Predicated region
        $region61: #{_lambda_.1} parent=55 // pred_check
          %p356 = pneg %p91
        $region62: #{_lambda_.1} parent=55 // pred_check_branch
          %358 = sbr.rel (%p356) target = $region64
        $region63: #{_lambda_.1} parent=55 // pred_region
          %359 = dma.done [#allocation7], 512
        $region64: #{_lambda_.1} parent=55 // pred_fallthru
          _
        // Predicated region
        $region65: #{_lambda_.1} parent=55 // pred_check
          %p360 = pneg %p112
        $region66: #{_lambda_.1} parent=55 // pred_check_branch
          %362 = sbr.rel (%p360) target = $region68
        $region67: #{_lambda_.1} parent=55 // pred_region
          %363 = dma.done [#allocation7], 512
        $region68: #{_lambda_.1} parent=55 // pred_fallthru
          _
        // Predicated region
        $region69: #{_lambda_.1} parent=55 // pred_check
          %p364 = pneg %p154
        $region70: #{_lambda_.1} parent=55 // pred_check_branch
          %366 = sbr.rel (%p364) target = $region72
        $region71: #{_lambda_.1} parent=55 // pred_region
          %367 = dma.done [#allocation10], 512
        $region72: #{_lambda_.1} parent=55 // pred_fallthru
          _
        // Predicated region
        $region73: #{_lambda_.1} parent=55 // pred_check
          %p368 = pneg %p196
        $region74: #{_lambda_.1} parent=55 // pred_check_branch
          %370 = sbr.rel (%p368) target = $region76
        $region75: #{_lambda_.1} parent=55 // pred_region
          %371 = dma.done [#allocation10], 512
        $region76: #{_lambda_.1} parent=55 // pred_fallthru
          _
        %s372 = smul.u32 8, %s28
        %p373 = scmp.lt.s32.totalorder %s372, 15
        %s374 = scalar_select %p373, %s372, 15
        %s375 = smul.addr %s374, 2
        %s376 = scalar_lea.vmem %s0, %s375
        %p377 = pneg %p49
        %p378 = pneg %p46
        %p379 = pneg %p70
        %p380 = pneg %p67
        %p381 = pneg %p91
        %p382 = pneg %p88
        %p383 = pneg %p112
        %p384 = pneg %p109
        %p385 = pneg %p133
        %p386 = pneg %p130
        %p387 = pneg %p154
        %p388 = pneg %p151
        %p389 = pneg %p175
        %p390 = pneg %p172
        %p391 = pneg %p196
        %p392 = pneg %p193
        %p393 = pneg %p217
        %p394 = pneg %p214
        %p395 = pneg %p243
        %p396 = pneg %p240
        %s397 = sand.u32 %s230, 1
        %s398 = scalar_lea.sflag [#allocation5], %s397
        %s399 = sand.u32 %s230, 1
        %s400 = smul.addr %s399, 8
        %s401 = scalar_lea.vmem [#allocation12], %s400
        %s402 = smul.u32 8, %s28
        %p403 = scmp.lt.s32.totalorder %s402, 15
        %s404 = scalar_select %p403, %s402, 15
        %s405 = smul.addr %s404, 2
        %s406 = scalar_lea.vmem %s0, %s405
        %s407 = smul.u32 8, %s28
        %s408 = smul.u32 8, %s28
        %v409 = vld [vmem:[%s406] sm:$0xff]
        %v410 = vld [vmem:[%s406 + $0x8] sm:$0xff]
        %v411 = vld [vmem:[#allocation3] sm:$0xff]
        %v412 = vld [vmem:[#allocation3 + $0x8] sm:$0xff]
        %v413 = vld [vmem:[#allocation3 + $0x10] sm:$0xff]
        %v414 = vld [vmem:[#allocation3 + $0x18] sm:$0xff]
        %v415 = vld [vmem:[#allocation6] sm:$0xff]
        %v416 = vld [vmem:[#allocation6 + $0x8] sm:$0xff]
        %v417 = vld [vmem:[#allocation6 + $0x10] sm:$0xff]
        %v418 = vld [vmem:[#allocation6 + $0x18] sm:$0xff]
        %420 = vset.pattern.permute.xlu0 0
        %421 = vperm.xlu0 %420, %v411
        %v422 = vpop.permute.xlu0 %421
        %425 = vset.pattern.permute.xlu0 0
        %426 = vperm.xlu0 %425, %v412
        %v427 = vpop.permute.xlu0 %426
        %430 = vset.pattern.permute.xlu0 0
        %431 = vperm.xlu0 %430, %v413
        %v432 = vpop.permute.xlu0 %431
        %435 = vset.pattern.permute.xlu0 0
        %436 = vperm.xlu0 %435, %v414
        %v437 = vpop.permute.xlu0 %436
        %v441 = vlaneseq
        %v442 = vshrl.u32 %v441, 7
        %v443 = vsub.s32 0, %v442
        %v444 = vrot.slane %v409, %v443
        %v445 = vlaneseq
        %v446 = vshrl.u32 %v445, 7
        %v447 = vsub.s32 2, %v446
        %v448 = vrot.slane %v409, %v447
        %v449 = vlaneseq
        %v450 = vshrl.u32 %v449, 7
        %v451 = vsub.s32 4, %v450
        %v452 = vrot.slane %v409, %v451
        %v453 = vlaneseq
        %v454 = vshrl.u32 %v453, 7
        %v455 = vsub.s32 6, %v454
        %v456 = vrot.slane %v409, %v455
        %v457 = vlaneseq
        %v458 = vshrl.u32 %v457, 7
        %v459 = vsub.s32 0, %v458
        %v460 = vrot.slane %v410, %v459
        %v461 = vlaneseq
        %v462 = vshrl.u32 %v461, 7
        %v463 = vsub.s32 2, %v462
        %v464 = vrot.slane %v410, %v463
        %v465 = vlaneseq
        %v466 = vshrl.u32 %v465, 7
        %v467 = vsub.s32 4, %v466
        %v468 = vrot.slane %v410, %v467
        %v469 = vlaneseq
        %v470 = vshrl.u32 %v469, 7
        %v471 = vsub.s32 6, %v470
        %v472 = vrot.slane %v410, %v471
        %v481 = vlaneseq
        %v482 = vshrl.u32 %v481, 7
        %v483 = vsub.s32 0, %v482
        %v484 = vrot.slane %v444, %v483
        %v485 = vlaneseq
        %v486 = vshrl.u32 %v485, 7
        %v487 = vsub.s32 0, %v486
        %v488 = vrot.slane %v448, %v487
        %v489 = vlaneseq
        %v490 = vshrl.u32 %v489, 7
        %v491 = vsub.s32 0, %v490
        %v492 = vrot.slane %v452, %v491
        %v493 = vlaneseq
        %v494 = vshrl.u32 %v493, 7
        %v495 = vsub.s32 0, %v494
        %v496 = vrot.slane %v456, %v495
        %v497 = vlaneseq
        %v498 = vshrl.u32 %v497, 7
        %v499 = vsub.s32 0, %v498
        %v500 = vrot.slane %v460, %v499
        %v501 = vlaneseq
        %v502 = vshrl.u32 %v501, 7
        %v503 = vsub.s32 0, %v502
        %v504 = vrot.slane %v464, %v503
        %v505 = vlaneseq
        %v506 = vshrl.u32 %v505, 7
        %v507 = vsub.s32 0, %v506
        %v508 = vrot.slane %v468, %v507
        %v509 = vlaneseq
        %v510 = vshrl.u32 %v509, 7
        %v511 = vsub.s32 0, %v510
        %v512 = vrot.slane %v472, %v511
        %v513 = vmul.f32 %v422, %v484
        %v514 = vmul.f32 %v422, %v488
        %v515 = vmul.f32 %v422, %v492
        %v516 = vmul.f32 %v422, %v496
        %v517 = vmul.f32 %v422, %v500
        %v518 = vmul.f32 %v422, %v504
        %v519 = vmul.f32 %v422, %v508
        %v520 = vmul.f32 %v422, %v512
        %v521 = vmul.f32 %v427, %v484
        %v522 = vmul.f32 %v427, %v488
        %v523 = vmul.f32 %v427, %v492
        %v524 = vmul.f32 %v427, %v496
        %v525 = vmul.f32 %v427, %v500
        %v526 = vmul.f32 %v427, %v504
        %v527 = vmul.f32 %v427, %v508
        %v528 = vmul.f32 %v427, %v512
        %v529 = vmul.f32 %v432, %v484
        %v530 = vmul.f32 %v432, %v488
        %v531 = vmul.f32 %v432, %v492
        %v532 = vmul.f32 %v432, %v496
        %v533 = vmul.f32 %v432, %v500
        %v534 = vmul.f32 %v432, %v504
        %v535 = vmul.f32 %v432, %v508
        %v536 = vmul.f32 %v432, %v512
        %v537 = vmul.f32 %v437, %v484
        %v538 = vmul.f32 %v437, %v488
        %v539 = vmul.f32 %v437, %v492
        %v540 = vmul.f32 %v437, %v496
        %v541 = vmul.f32 %v437, %v500
        %v542 = vmul.f32 %v437, %v504
        %v543 = vmul.f32 %v437, %v508
        %v544 = vmul.f32 %v437, %v512
        %545 = vset.pattern.permute.xlu0 1
        %546 = vperm.xlu0 %545, %v411
        %v547 = vpop.permute.xlu0 %546
        %549 = vset.pattern.permute.xlu0 1
        %550 = vperm.xlu0 %549, %v412
        %v551 = vpop.permute.xlu0 %550
        %553 = vset.pattern.permute.xlu0 1
        %554 = vperm.xlu0 %553, %v413
        %v555 = vpop.permute.xlu0 %554
        %557 = vset.pattern.permute.xlu0 1
        %558 = vperm.xlu0 %557, %v414
        %v559 = vpop.permute.xlu0 %558
        %v561 = vlaneseq
        %v562 = vshrl.u32 %v561, 7
        %v563 = vsub.s32 1, %v562
        %v564 = vrot.slane %v409, %v563
        %v565 = vlaneseq
        %v566 = vshrl.u32 %v565, 7
        %v567 = vsub.s32 3, %v566
        %v568 = vrot.slane %v409, %v567
        %v569 = vlaneseq
        %v570 = vshrl.u32 %v569, 7
        %v571 = vsub.s32 5, %v570
        %v572 = vrot.slane %v409, %v571
        %v573 = vlaneseq
        %v574 = vshrl.u32 %v573, 7
        %v575 = vsub.s32 7, %v574
        %v576 = vrot.slane %v409, %v575
        %v577 = vlaneseq
        %v578 = vshrl.u32 %v577, 7
        %v579 = vsub.s32 1, %v578
        %v580 = vrot.slane %v410, %v579
        %v581 = vlaneseq
        %v582 = vshrl.u32 %v581, 7
        %v583 = vsub.s32 3, %v582
        %v584 = vrot.slane %v410, %v583
        %v585 = vlaneseq
        %v586 = vshrl.u32 %v585, 7
        %v587 = vsub.s32 5, %v586
        %v588 = vrot.slane %v410, %v587
        %v589 = vlaneseq
        %v590 = vshrl.u32 %v589, 7
        %v591 = vsub.s32 7, %v590
        %v592 = vrot.slane %v410, %v591
        %v601 = vlaneseq
        %v602 = vshrl.u32 %v601, 7
        %v603 = vsub.s32 1, %v602
        %v604 = vrot.slane %v564, %v603
        %v605 = vlaneseq
        %v606 = vshrl.u32 %v605, 7
        %v607 = vsub.s32 1, %v606
        %v608 = vrot.slane %v568, %v607
        %v609 = vlaneseq
        %v610 = vshrl.u32 %v609, 7
        %v611 = vsub.s32 1, %v610
        %v612 = vrot.slane %v572, %v611
        %v613 = vlaneseq
        %v614 = vshrl.u32 %v613, 7
        %v615 = vsub.s32 1, %v614
        %v616 = vrot.slane %v576, %v615
        %v617 = vlaneseq
        %v618 = vshrl.u32 %v617, 7
        %v619 = vsub.s32 1, %v618
        %v620 = vrot.slane %v580, %v619
        %v621 = vlaneseq
        %v622 = vshrl.u32 %v621, 7
        %v623 = vsub.s32 1, %v622
        %v624 = vrot.slane %v584, %v623
        %v625 = vlaneseq
        %v626 = vshrl.u32 %v625, 7
        %v627 = vsub.s32 1, %v626
        %v628 = vrot.slane %v588, %v627
        %v629 = vlaneseq
        %v630 = vshrl.u32 %v629, 7
        %v631 = vsub.s32 1, %v630
        %v632 = vrot.slane %v592, %v631
        %v633 = vmul.f32 %v547, %v604
        %v634 = vmul.f32 %v547, %v608
        %v635 = vmul.f32 %v547, %v612
        %v636 = vmul.f32 %v547, %v616
        %v637 = vmul.f32 %v547, %v620
        %v638 = vmul.f32 %v547, %v624
        %v639 = vmul.f32 %v547, %v628
        %v640 = vmul.f32 %v547, %v632
        %v641 = vmul.f32 %v551, %v604
        %v642 = vmul.f32 %v551, %v608
        %v643 = vmul.f32 %v551, %v612
        %v644 = vmul.f32 %v551, %v616
        %v645 = vmul.f32 %v551, %v620
        %v646 = vmul.f32 %v551, %v624
        %v647 = vmul.f32 %v551, %v628
        %v648 = vmul.f32 %v551, %v632
        %v649 = vmul.f32 %v555, %v604
        %v650 = vmul.f32 %v555, %v608
        %v651 = vmul.f32 %v555, %v612
        %v652 = vmul.f32 %v555, %v616
        %v653 = vmul.f32 %v555, %v620
        %v654 = vmul.f32 %v555, %v624
        %v655 = vmul.f32 %v555, %v628
        %v656 = vmul.f32 %v555, %v632
        %v657 = vmul.f32 %v559, %v604
        %v658 = vmul.f32 %v559, %v608
        %v659 = vmul.f32 %v559, %v612
        %v660 = vmul.f32 %v559, %v616
        %v661 = vmul.f32 %v559, %v620
        %v662 = vmul.f32 %v559, %v624
        %v663 = vmul.f32 %v559, %v628
        %v664 = vmul.f32 %v559, %v632
        %v665 = vadd.f32 %v513, %v633
        %v666 = vadd.f32 %v514, %v634
        %v667 = vadd.f32 %v515, %v635
        %v668 = vadd.f32 %v516, %v636
        %v669 = vadd.f32 %v517, %v637
        %v670 = vadd.f32 %v518, %v638
        %v671 = vadd.f32 %v519, %v639
        %v672 = vadd.f32 %v520, %v640
        %v673 = vadd.f32 %v521, %v641
        %v674 = vadd.f32 %v522, %v642
        %v675 = vadd.f32 %v523, %v643
        %v676 = vadd.f32 %v524, %v644
        %v677 = vadd.f32 %v525, %v645
        %v678 = vadd.f32 %v526, %v646
        %v679 = vadd.f32 %v527, %v647
        %v680 = vadd.f32 %v528, %v648
        %v681 = vadd.f32 %v529, %v649
        %v682 = vadd.f32 %v530, %v650
        %v683 = vadd.f32 %v531, %v651
        %v684 = vadd.f32 %v532, %v652
        %v685 = vadd.f32 %v533, %v653
        %v686 = vadd.f32 %v534, %v654
        %v687 = vadd.f32 %v535, %v655
        %v688 = vadd.f32 %v536, %v656
        %v689 = vadd.f32 %v537, %v657
        %v690 = vadd.f32 %v538, %v658
        %v691 = vadd.f32 %v539, %v659
        %v692 = vadd.f32 %v540, %v660
        %v693 = vadd.f32 %v541, %v661
        %v694 = vadd.f32 %v542, %v662
        %v695 = vadd.f32 %v543, %v663
        %v696 = vadd.f32 %v544, %v664
        %698 = vset.pattern.permute.xlu0 0
        %699 = vperm.xlu0 %698, %v415
        %v700 = vpop.permute.xlu0 %699
        %703 = vset.pattern.permute.xlu0 0
        %704 = vperm.xlu0 %703, %v416
        %v705 = vpop.permute.xlu0 %704
        %708 = vset.pattern.permute.xlu0 0
        %709 = vperm.xlu0 %708, %v417
        %v710 = vpop.permute.xlu0 %709
        %713 = vset.pattern.permute.xlu0 0
        %714 = vperm.xlu0 %713, %v418
        %v715 = vpop.permute.xlu0 %714
        %v717 = vadd.f32 %v665, %v700
        %v718 = vadd.f32 %v666, %v700
        %v719 = vadd.f32 %v667, %v700
        %v720 = vadd.f32 %v668, %v700
        %v721 = vadd.f32 %v669, %v700
        %v722 = vadd.f32 %v670, %v700
        %v723 = vadd.f32 %v671, %v700
        %v724 = vadd.f32 %v672, %v700
        %v725 = vadd.f32 %v673, %v705
        %v726 = vadd.f32 %v674, %v705
        %v727 = vadd.f32 %v675, %v705
        %v728 = vadd.f32 %v676, %v705
        %v729 = vadd.f32 %v677, %v705
        %v730 = vadd.f32 %v678, %v705
        %v731 = vadd.f32 %v679, %v705
        %v732 = vadd.f32 %v680, %v705
        %v733 = vadd.f32 %v681, %v710
        %v734 = vadd.f32 %v682, %v710
        %v735 = vadd.f32 %v683, %v710
        %v736 = vadd.f32 %v684, %v710
        %v737 = vadd.f32 %v685, %v710
        %v738 = vadd.f32 %v686, %v710
        %v739 = vadd.f32 %v687, %v710
        %v740 = vadd.f32 %v688, %v710
        %v741 = vadd.f32 %v689, %v715
        %v742 = vadd.f32 %v690, %v715
        %v743 = vadd.f32 %v691, %v715
        %v744 = vadd.f32 %v692, %v715
        %v745 = vadd.f32 %v693, %v715
        %v746 = vadd.f32 %v694, %v715
        %v747 = vadd.f32 %v695, %v715
        %v748 = vadd.f32 %v696, %v715
        %v749 = vtanh.pop %v717
        %v750 = vtanh.pop %v718
        %v751 = vtanh.pop %v719
        %v752 = vtanh.pop %v720
        %v753 = vtanh.pop %v721
        %v754 = vtanh.pop %v722
        %v755 = vtanh.pop %v723
        %v756 = vtanh.pop %v724
        %v757 = vtanh.pop %v725
        %v758 = vtanh.pop %v726
        %v759 = vtanh.pop %v727
        %v760 = vtanh.pop %v728
        %v761 = vtanh.pop %v729
        %v762 = vtanh.pop %v730
        %v763 = vtanh.pop %v731
        %v764 = vtanh.pop %v732
        %v765 = vtanh.pop %v733
        %v766 = vtanh.pop %v734
        %v767 = vtanh.pop %v735
        %v768 = vtanh.pop %v736
        %v769 = vtanh.pop %v737
        %v770 = vtanh.pop %v738
        %v771 = vtanh.pop %v739
        %v772 = vtanh.pop %v740
        %v773 = vtanh.pop %v741
        %v774 = vtanh.pop %v742
        %v775 = vtanh.pop %v743
        %v776 = vtanh.pop %v744
        %v777 = vtanh.pop %v745
        %v778 = vtanh.pop %v746
        %v779 = vtanh.pop %v747
        %v780 = vtanh.pop %v748
        %v781 = vld [vmem:[#allocation8] sm:$0xff]
        %v782 = vld [vmem:[#allocation8 + $0x8] sm:$0xff]
        %v783 = vld [vmem:[#allocation8 + $0x10] sm:$0xff]
        %v784 = vld [vmem:[#allocation8 + $0x18] sm:$0xff]
        %v785 = vld [vmem:[%s4] sm:$0xff]
        %v786 = vld [vmem:[%s4 + $0x8] sm:$0xff]
        %v787 = vld [vmem:[%s4 + $0x10] sm:$0xff]
        %v788 = vld [vmem:[%s4 + $0x18] sm:$0xff]
        %790 = vset.pattern.permute.xlu0 0
        %791 = vperm.xlu0 %790, %v785
        %v792 = vpop.permute.xlu0 %791
        %795 = vset.pattern.permute.xlu0 0
        %796 = vperm.xlu0 %795, %v786
        %v797 = vpop.permute.xlu0 %796
        %800 = vset.pattern.permute.xlu0 0
        %801 = vperm.xlu0 %800, %v787
        %v802 = vpop.permute.xlu0 %801
        %805 = vset.pattern.permute.xlu0 0
        %806 = vperm.xlu0 %805, %v788
        %v807 = vpop.permute.xlu0 %806
        %vm809 = vcmask 261120
        %v811 = vsel %vm809, %v781, 0
        %v814 = vsel %vm809, %v782, 0
        %v817 = vsel %vm809, %v783, 0
        %v820 = vsel %vm809, %v784, 0
        %822 = vmatprep.subr.mxu0 %v750
        %823 = vmatpush1.msra.mxu0 %v749
        %824 = vmatprep.subr.mxu0 %v758
        %825 = vmatpush1.msra.mxu0 %v757
        %826 = vmatprep.subr.mxu0 %v766
        %827 = vmatpush1.msra.mxu0 %v765
        %828 = vmatprep.subr.mxu0 %v774
        %829 = vmatpush1.msra.mxu0 %v773
        %830 = vmatprep.subr.mxu0 0.0
        %831 = vmatpush1.msra.mxu0 0.0
        %832 = vmatprep.subr.mxu0 0.0
        %833 = vmatpush1.msra.mxu0 0.0
        %834 = vmatprep.subr.mxu0 0.0
        %835 = vmatpush1.msra.mxu0 0.0
        %836 = vmatprep.subr.mxu0 0.0
        %837 = vmatpush1.msra.mxu0 0.0
        %838 = vmatprep.subr.mxu0 0.0
        %839 = vmatpush1.msra.mxu0 0.0
        %840 = vmatprep.subr.mxu0 0.0
        %841 = vmatpush1.msra.mxu0 0.0
        %842 = vmatprep.subr.mxu0 0.0
        %843 = vmatpush1.msra.mxu0 0.0
        %844 = vmatprep.subr.mxu0 0.0
        %845 = vmatpush1.msra.mxu0 0.0
        %846 = vmatprep.subr.mxu0 0.0
        %847 = vmatpush1.msra.mxu0 0.0
        %848 = vmatprep.subr.mxu0 0.0
        %849 = vmatpush1.msra.mxu0 0.0
        %850 = vmatprep.subr.mxu0 0.0
        %851 = vmatpush1.msra.mxu0 0.0
        %852 = vmatprep.subr.mxu0 0.0
        %853 = vmatpush1.msra.mxu0 0.0
        %854 = vmatprep.subr.mxu0 0.0
        %855 = vmatpush1.msra.mxu0 0.0
        %856 = vmatprep.subr.mxu0 0.0
        %857 = vmatpush1.msra.mxu0 0.0
        %858 = vmatprep.subr.mxu0 0.0
        %859 = vmatpush1.msra.mxu0 0.0
        %860 = vmatprep.subr.mxu0 0.0
        %861 = vmatpush1.msra.mxu0 0.0
        %862 = vmatprep.subr.mxu0 0.0
        %863 = vmatpush1.msra.mxu0 0.0
        %864 = vmatprep.subr.mxu0 0.0
        %865 = vmatpush1.msra.mxu0 0.0
        %866 = vmatprep.subr.mxu0 0.0
        %867 = vmatpush1.msra.mxu0 0.0
        %868 = vmatprep.subr.mxu0 0.0
        %869 = vmatpush1.msra.mxu0 0.0
        %870 = vmatprep.subr.mxu0 0.0
        %871 = vmatpush1.msra.mxu0 0.0
        %872 = vmatprep.subr.mxu0 0.0
        %873 = vmatpush1.msra.mxu0 0.0
        %874 = vmatprep.subr.mxu0 0.0
        %875 = vmatpush1.msra.mxu0 0.0
        %876 = vmatprep.subr.mxu0 0.0
        %877 = vmatpush1.msra.mxu0 0.0
        %878 = vmatprep.subr.mxu0 0.0
        %879 = vmatpush1.msra.mxu0 0.0
        %880 = vmatprep.subr.mxu0 0.0
        %881 = vmatpush1.msra.mxu0 0.0
        %882 = vmatprep.subr.mxu0 0.0
        %883 = vmatpush1.msra.mxu0 0.0
        %884 = vmatprep.subr.mxu0 0.0
        %885 = vmatpush1.msra.mxu0 0.0
        %886 = vmatprep.mubr.f32.mxu0 0.0
        %887 = vmatmul.mubr.f32.gmra.mrb[0].mxu0 %v811
        %v888 = vpop.f32.mrb[0].mxu0
        %v889 = vadd.f32 %v792, %v888
        %v890 = vpop.f32.mrb[0].mxu0
        %v891 = vadd.f32 %v792, %v890
        %892 = vmatprep.mubr.f32.mxu0 0.0
        %893 = vmatmul.mubr.f32.gmra.mrb[0].mxu0 %v814
        %v894 = vpop.f32.mrb[0].mxu0
        %v895 = vadd.f32 %v797, %v894
        %v896 = vpop.f32.mrb[0].mxu0
        %v897 = vadd.f32 %v797, %v896
        %898 = vmatprep.mubr.f32.mxu0 0.0
        %899 = vmatmul.mubr.f32.gmra.mrb[0].mxu0 %v817
        %v900 = vpop.f32.mrb[0].mxu0
        %v901 = vadd.f32 %v802, %v900
        %v902 = vpop.f32.mrb[0].mxu0
        %v903 = vadd.f32 %v802, %v902
        %904 = vmatprep.mubr.f32.mxu0 0.0
        %905 = vmatmul.mubr.f32.gmra.mrb[0].mxu0 %v820
        %v906 = vpop.f32.mrb[0].mxu0
        %v907 = vadd.f32 %v807, %v906
        %v908 = vpop.f32.mrb[0].mxu0
        %v909 = vadd.f32 %v807, %v908
        %910 = vdwg.mxu0
        %911 = vmatprep.subr.mxu0 %v752
        %912 = vmatpush1.msra.mxu0 %v751
        %913 = vmatprep.subr.mxu0 %v760
        %914 = vmatpush1.msra.mxu0 %v759
        %915 = vmatprep.subr.mxu0 %v768
        %916 = vmatpush1.msra.mxu0 %v767
        %917 = vmatprep.subr.mxu0 %v776
        %918 = vmatpush1.msra.mxu0 %v775
        %919 = vmatprep.subr.mxu0 0.0
        %920 = vmatpush1.msra.mxu0 0.0
        %921 = vmatprep.subr.mxu0 0.0
        %922 = vmatpush1.msra.mxu0 0.0
        %923 = vmatprep.subr.mxu0 0.0
        %924 = vmatpush1.msra.mxu0 0.0
        %925 = vmatprep.subr.mxu0 0.0
        %926 = vmatpush1.msra.mxu0 0.0
        %927 = vmatprep.subr.mxu0 0.0
        %928 = vmatpush1.msra.mxu0 0.0
        %929 = vmatprep.subr.mxu0 0.0
        %930 = vmatpush1.msra.mxu0 0.0
        %931 = vmatprep.subr.mxu0 0.0
        %932 = vmatpush1.msra.mxu0 0.0
        %933 = vmatprep.subr.mxu0 0.0
        %934 = vmatpush1.msra.mxu0 0.0
        %935 = vmatprep.subr.mxu0 0.0
        %936 = vmatpush1.msra.mxu0 0.0
        %937 = vmatprep.subr.mxu0 0.0
        %938 = vmatpush1.msra.mxu0 0.0
        %939 = vmatprep.subr.mxu0 0.0
        %940 = vmatpush1.msra.mxu0 0.0
        %941 = vmatprep.subr.mxu0 0.0
        %942 = vmatpush1.msra.mxu0 0.0
        %943 = vmatprep.subr.mxu0 0.0
        %944 = vmatpush1.msra.mxu0 0.0
        %945 = vmatprep.subr.mxu0 0.0
        %946 = vmatpush1.msra.mxu0 0.0
        %947 = vmatprep.subr.mxu0 0.0
        %948 = vmatpush1.msra.mxu0 0.0
        %949 = vmatprep.subr.mxu0 0.0
        %950 = vmatpush1.msra.mxu0 0.0
        %951 = vmatprep.subr.mxu0 0.0
        %952 = vmatpush1.msra.mxu0 0.0
        %953 = vmatprep.subr.mxu0 0.0
        %954 = vmatpush1.msra.mxu0 0.0
        %955 = vmatprep.subr.mxu0 0.0
        %956 = vmatpush1.msra.mxu0 0.0
        %957 = vmatprep.subr.mxu0 0.0
        %958 = vmatpush1.msra.mxu0 0.0
        %959 = vmatprep.subr.mxu0 0.0
        %960 = vmatpush1.msra.mxu0 0.0
        %961 = vmatprep.subr.mxu0 0.0
        %962 = vmatpush1.msra.mxu0 0.0
        %963 = vmatprep.subr.mxu0 0.0
        %964 = vmatpush1.msra.mxu0 0.0
        %965 = vmatprep.subr.mxu0 0.0
        %966 = vmatpush1.msra.mxu0 0.0
        %967 = vmatprep.subr.mxu0 0.0
        %968 = vmatpush1.msra.mxu0 0.0
        %969 = vmatprep.subr.mxu0 0.0
        %970 = vmatpush1.msra.mxu0 0.0
        %971 = vmatprep.subr.mxu0 0.0
        %972 = vmatpush1.msra.mxu0 0.0
        %973 = vmatprep.subr.mxu0 0.0
        %974 = vmatpush1.msra.mxu0 0.0
        %975 = vmatprep.mubr.f32.mxu0 0.0
        %976 = vmatmul.mubr.f32.gmra.mrb[0].mxu0 %v811
        %v977 = vpop.f32.mrb[0].mxu0
        %v978 = vadd.f32 %v792, %v977
        %v979 = vpop.f32.mrb[0].mxu0
        %v980 = vadd.f32 %v792, %v979
        %981 = vmatprep.mubr.f32.mxu0 0.0
        %982 = vmatmul.mubr.f32.gmra.mrb[0].mxu0 %v814
        %v983 = vpop.f32.mrb[0].mxu0
        %v984 = vadd.f32 %v797, %v983
        %v985 = vpop.f32.mrb[0].mxu0
        %v986 = vadd.f32 %v797, %v985
        %987 = vmatprep.mubr.f32.mxu0 0.0
        %988 = vmatmul.mubr.f32.gmra.mrb[0].mxu0 %v817
        %v989 = vpop.f32.mrb[0].mxu0
        %v990 = vadd.f32 %v802, %v989
        %v991 = vpop.f32.mrb[0].mxu0
        %v992 = vadd.f32 %v802, %v991
        %993 = vmatprep.mubr.f32.mxu0 0.0
        %994 = vmatmul.mubr.f32.gmra.mrb[0].mxu0 %v820
        %v995 = vpop.f32.mrb[0].mxu0
        %v996 = vadd.f32 %v807, %v995
        %v997 = vpop.f32.mrb[0].mxu0
        %v998 = vadd.f32 %v807, %v997
        %999 = vdwg.mxu0
        %1000 = vmatprep.subr.mxu0 %v754
        %1001 = vmatpush1.msra.mxu0 %v753
        %1002 = vmatprep.subr.mxu0 %v762
        %1003 = vmatpush1.msra.mxu0 %v761
        %1004 = vmatprep.subr.mxu0 %v770
        %1005 = vmatpush1.msra.mxu0 %v769
        %1006 = vmatprep.subr.mxu0 %v778
        %1007 = vmatpush1.msra.mxu0 %v777
        %1008 = vmatprep.subr.mxu0 0.0
        %1009 = vmatpush1.msra.mxu0 0.0
        %1010 = vmatprep.subr.mxu0 0.0
        %1011 = vmatpush1.msra.mxu0 0.0
        %1012 = vmatprep.subr.mxu0 0.0
        %1013 = vmatpush1.msra.mxu0 0.0
        %1014 = vmatprep.subr.mxu0 0.0
        %1015 = vmatpush1.msra.mxu0 0.0
        %1016 = vmatprep.subr.mxu0 0.0
        %1017 = vmatpush1.msra.mxu0 0.0
        %1018 = vmatprep.subr.mxu0 0.0
        %1019 = vmatpush1.msra.mxu0 0.0
        %1020 = vmatprep.subr.mxu0 0.0
        %1021 = vmatpush1.msra.mxu0 0.0
        %1022 = vmatprep.subr.mxu0 0.0
        %1023 = vmatpush1.msra.mxu0 0.0
        %1024 = vmatprep.subr.mxu0 0.0
        %1025 = vmatpush1.msra.mxu0 0.0
        %1026 = vmatprep.subr.mxu0 0.0
        %1027 = vmatpush1.msra.mxu0 0.0
        %1028 = vmatprep.subr.mxu0 0.0
        %1029 = vmatpush1.msra.mxu0 0.0
        %1030 = vmatprep.subr.mxu0 0.0
        %1031 = vmatpush1.msra.mxu0 0.0
        %1032 = vmatprep.subr.mxu0 0.0
        %1033 = vmatpush1.msra.mxu0 0.0
        %1034 = vmatprep.subr.mxu0 0.0
        %1035 = vmatpush1.msra.mxu0 0.0
        %1036 = vmatprep.subr.mxu0 0.0
        %1037 = vmatpush1.msra.mxu0 0.0
        %1038 = vmatprep.subr.mxu0 0.0
        %1039 = vmatpush1.msra.mxu0 0.0
        %1040 = vmatprep.subr.mxu0 0.0
        %1041 = vmatpush1.msra.mxu0 0.0
        %1042 = vmatprep.subr.mxu0 0.0
        %1043 = vmatpush1.msra.mxu0 0.0
        %1044 = vmatprep.subr.mxu0 0.0
        %1045 = vmatpush1.msra.mxu0 0.0
        %1046 = vmatprep.subr.mxu0 0.0
        %1047 = vmatpush1.msra.mxu0 0.0
        %1048 = vmatprep.subr.mxu0 0.0
        %1049 = vmatpush1.msra.mxu0 0.0
        %1050 = vmatprep.subr.mxu0 0.0
        %1051 = vmatpush1.msra.mxu0 0.0
        %1052 = vmatprep.subr.mxu0 0.0
        %1053 = vmatpush1.msra.mxu0 0.0
        %1054 = vmatprep.subr.mxu0 0.0
        %1055 = vmatpush1.msra.mxu0 0.0
        %1056 = vmatprep.subr.mxu0 0.0
        %1057 = vmatpush1.msra.mxu0 0.0
        %1058 = vmatprep.subr.mxu0 0.0
        %1059 = vmatpush1.msra.mxu0 0.0
        %1060 = vmatprep.subr.mxu0 0.0
        %1061 = vmatpush1.msra.mxu0 0.0
        %1062 = vmatprep.subr.mxu0 0.0
        %1063 = vmatpush1.msra.mxu0 0.0
        %1064 = vmatprep.mubr.f32.mxu0 0.0
        %1065 = vmatmul.mubr.f32.gmra.mrb[0].mxu0 %v811
        %v1066 = vpop.f32.mrb[0].mxu0
        %v1067 = vadd.f32 %v792, %v1066
        %v1068 = vpop.f32.mrb[0].mxu0
        %v1069 = vadd.f32 %v792, %v1068
        %1070 = vmatprep.mubr.f32.mxu0 0.0
        %1071 = vmatmul.mubr.f32.gmra.mrb[0].mxu0 %v814
        %v1072 = vpop.f32.mrb[0].mxu0
        %v1073 = vadd.f32 %v797, %v1072
        %v1074 = vpop.f32.mrb[0].mxu0
        %v1075 = vadd.f32 %v797, %v1074
        %1076 = vmatprep.mubr.f32.mxu0 0.0
        %1077 = vmatmul.mubr.f32.gmra.mrb[0].mxu0 %v817
        %v1078 = vpop.f32.mrb[0].mxu0
        %v1079 = vadd.f32 %v802, %v1078
        %v1080 = vpop.f32.mrb[0].mxu0
        %v1081 = vadd.f32 %v802, %v1080
        %1082 = vmatprep.mubr.f32.mxu0 0.0
        %1083 = vmatmul.mubr.f32.gmra.mrb[0].mxu0 %v820
        %v1084 = vpop.f32.mrb[0].mxu0
        %v1085 = vadd.f32 %v807, %v1084
        %v1086 = vpop.f32.mrb[0].mxu0
        %v1087 = vadd.f32 %v807, %v1086
        %1088 = vdwg.mxu0
        %1089 = vmatprep.subr.mxu0 %v756
        %1090 = vmatpush1.msra.mxu0 %v755
        %1091 = vmatprep.subr.mxu0 %v764
        %1092 = vmatpush1.msra.mxu0 %v763
        %1093 = vmatprep.subr.mxu0 %v772
        %1094 = vmatpush1.msra.mxu0 %v771
        %1095 = vmatprep.subr.mxu0 %v780
        %1096 = vmatpush1.msra.mxu0 %v779
        %1097 = vmatprep.subr.mxu0 0.0
        %1098 = vmatpush1.msra.mxu0 0.0
        %1099 = vmatprep.subr.mxu0 0.0
        %1100 = vmatpush1.msra.mxu0 0.0
        %1101 = vmatprep.subr.mxu0 0.0
        %1102 = vmatpush1.msra.mxu0 0.0
        %1103 = vmatprep.subr.mxu0 0.0
        %1104 = vmatpush1.msra.mxu0 0.0
        %1105 = vmatprep.subr.mxu0 0.0
        %1106 = vmatpush1.msra.mxu0 0.0
        %1107 = vmatprep.subr.mxu0 0.0
        %1108 = vmatpush1.msra.mxu0 0.0
        %1109 = vmatprep.subr.mxu0 0.0
        %1110 = vmatpush1.msra.mxu0 0.0
        %1111 = vmatprep.subr.mxu0 0.0
        %1112 = vmatpush1.msra.mxu0 0.0
        %1113 = vmatprep.subr.mxu0 0.0
        %1114 = vmatpush1.msra.mxu0 0.0
        %1115 = vmatprep.subr.mxu0 0.0
        %1116 = vmatpush1.msra.mxu0 0.0
        %1117 = vmatprep.subr.mxu0 0.0
        %1118 = vmatpush1.msra.mxu0 0.0
        %1119 = vmatprep.subr.mxu0 0.0
        %1120 = vmatpush1.msra.mxu0 0.0
        %1121 = vmatprep.subr.mxu0 0.0
        %1122 = vmatpush1.msra.mxu0 0.0
        %1123 = vmatprep.subr.mxu0 0.0
        %1124 = vmatpush1.msra.mxu0 0.0
        %1125 = vmatprep.subr.mxu0 0.0
        %1126 = vmatpush1.msra.mxu0 0.0
        %1127 = vmatprep.subr.mxu0 0.0
        %1128 = vmatpush1.msra.mxu0 0.0
        %1129 = vmatprep.subr.mxu0 0.0
        %1130 = vmatpush1.msra.mxu0 0.0
        %1131 = vmatprep.subr.mxu0 0.0
        %1132 = vmatpush1.msra.mxu0 0.0
        %1133 = vmatprep.subr.mxu0 0.0
        %1134 = vmatpush1.msra.mxu0 0.0
        %1135 = vmatprep.subr.mxu0 0.0
        %1136 = vmatpush1.msra.mxu0 0.0
        %1137 = vmatprep.subr.mxu0 0.0
        %1138 = vmatpush1.msra.mxu0 0.0
        %1139 = vmatprep.subr.mxu0 0.0
        %1140 = vmatpush1.msra.mxu0 0.0
        %1141 = vmatprep.subr.mxu0 0.0
        %1142 = vmatpush1.msra.mxu0 0.0
        %1143 = vmatprep.subr.mxu0 0.0
        %1144 = vmatpush1.msra.mxu0 0.0
        %1145 = vmatprep.subr.mxu0 0.0
        %1146 = vmatpush1.msra.mxu0 0.0
        %1147 = vmatprep.subr.mxu0 0.0
        %1148 = vmatpush1.msra.mxu0 0.0
        %1149 = vmatprep.subr.mxu0 0.0
        %1150 = vmatpush1.msra.mxu0 0.0
        %1151 = vmatprep.subr.mxu0 0.0
        %1152 = vmatpush1.msra.mxu0 0.0
        %1153 = vmatprep.mubr.f32.mxu0 0.0
        %1154 = vmatmul.mubr.f32.gmra.mrb[0].mxu0 %v811
        %v1155 = vpop.f32.mrb[0].mxu0
        %v1156 = vadd.f32 %v792, %v1155
        %v1157 = vpop.f32.mrb[0].mxu0
        %v1158 = vadd.f32 %v792, %v1157
        %1159 = vmatprep.mubr.f32.mxu0 0.0
        %1160 = vmatmul.mubr.f32.gmra.mrb[0].mxu0 %v814
        %v1161 = vpop.f32.mrb[0].mxu0
        %v1162 = vadd.f32 %v797, %v1161
        %v1163 = vpop.f32.mrb[0].mxu0
        %v1164 = vadd.f32 %v797, %v1163
        %1165 = vmatprep.mubr.f32.mxu0 0.0
        %1166 = vmatmul.mubr.f32.gmra.mrb[0].mxu0 %v817
        %v1167 = vpop.f32.mrb[0].mxu0
        %v1168 = vadd.f32 %v802, %v1167
        %v1169 = vpop.f32.mrb[0].mxu0
        %v1170 = vadd.f32 %v802, %v1169
        %1171 = vmatprep.mubr.f32.mxu0 0.0
        %1172 = vmatmul.mubr.f32.gmra.mrb[0].mxu0 %v820
        %v1173 = vpop.f32.mrb[0].mxu0
        %v1174 = vadd.f32 %v807, %v1173
        %v1175 = vpop.f32.mrb[0].mxu0
        %v1176 = vadd.f32 %v807, %v1175
        %1177 = vdwg.mxu0
        %v1178 = vtanh.pop %v889
        %v1179 = vtanh.pop %v891
        %v1180 = vtanh.pop %v978
        %v1181 = vtanh.pop %v980
        %v1182 = vtanh.pop %v1067
        %v1183 = vtanh.pop %v1069
        %v1184 = vtanh.pop %v1156
        %v1185 = vtanh.pop %v1158
        %v1186 = vtanh.pop %v895
        %v1187 = vtanh.pop %v897
        %v1188 = vtanh.pop %v984
        %v1189 = vtanh.pop %v986
        %v1190 = vtanh.pop %v1073
        %v1191 = vtanh.pop %v1075
        %v1192 = vtanh.pop %v1162
        %v1193 = vtanh.pop %v1164
        %v1194 = vtanh.pop %v901
        %v1195 = vtanh.pop %v903
        %v1196 = vtanh.pop %v990
        %v1197 = vtanh.pop %v992
        %v1198 = vtanh.pop %v1079
        %v1199 = vtanh.pop %v1081
        %v1200 = vtanh.pop %v1168
        %v1201 = vtanh.pop %v1170
        %v1202 = vtanh.pop %v907
        %v1203 = vtanh.pop %v909
        %v1204 = vtanh.pop %v996
        %v1205 = vtanh.pop %v998
        %v1206 = vtanh.pop %v1085
        %v1207 = vtanh.pop %v1087
        %v1208 = vtanh.pop %v1174
        %v1209 = vtanh.pop %v1176
        %v1210 = vld [vmem:[#allocation9] sm:$0xff]
        %v1211 = vld [vmem:[#allocation9 + $0x8] sm:$0xff]
        %v1212 = vld [vmem:[#allocation9 + $0x10] sm:$0xff]
        %v1213 = vld [vmem:[#allocation9 + $0x18] sm:$0xff]
        %v1214 = vld [vmem:[%s6] sm:$0xff]
        %v1215 = vld [vmem:[%s6 + $0x8] sm:$0xff]
        %v1216 = vld [vmem:[%s6 + $0x10] sm:$0xff]
        %v1217 = vld [vmem:[%s6 + $0x18] sm:$0xff]
        %1219 = vset.pattern.permute.xlu0 0
        %1220 = vperm.xlu0 %1219, %v1214
        %v1221 = vpop.permute.xlu0 %1220
        %1224 = vset.pattern.permute.xlu0 0
        %1225 = vperm.xlu0 %1224, %v1215
        %v1226 = vpop.permute.xlu0 %1225
        %1229 = vset.pattern.permute.xlu0 0
        %1230 = vperm.xlu0 %1229, %v1216
        %v1231 = vpop.permute.xlu0 %1230
        %1234 = vset.pattern.permute.xlu0 0
        %1235 = vperm.xlu0 %1234, %v1217
        %v1236 = vpop.permute.xlu0 %1235
        %v1239 = vsel %vm809, %v1210, 0
        %v1242 = vsel %vm809, %v1211, 0
        %v1245 = vsel %vm809, %v1212, 0
        %v1248 = vsel %vm809, %v1213, 0
        %1250 = vmatprep.subr.mxu0 %v1179
        %1251 = vmatpush1.msra.mxu0 %v1178
        %1252 = vmatprep.subr.mxu0 %v1187
        %1253 = vmatpush1.msra.mxu0 %v1186
        %1254 = vmatprep.subr.mxu0 %v1195
        %1255 = vmatpush1.msra.mxu0 %v1194
        %1256 = vmatprep.subr.mxu0 %v1203
        %1257 = vmatpush1.msra.mxu0 %v1202
        %1258 = vmatprep.subr.mxu0 0.0
        %1259 = vmatpush1.msra.mxu0 0.0
        %1260 = vmatprep.subr.mxu0 0.0
        %1261 = vmatpush1.msra.mxu0 0.0
        %1262 = vmatprep.subr.mxu0 0.0
        %1263 = vmatpush1.msra.mxu0 0.0
        %1264 = vmatprep.subr.mxu0 0.0
        %1265 = vmatpush1.msra.mxu0 0.0
        %1266 = vmatprep.subr.mxu0 0.0
        %1267 = vmatpush1.msra.mxu0 0.0
        %1268 = vmatprep.subr.mxu0 0.0
        %1269 = vmatpush1.msra.mxu0 0.0
        %1270 = vmatprep.subr.mxu0 0.0
        %1271 = vmatpush1.msra.mxu0 0.0
        %1272 = vmatprep.subr.mxu0 0.0
        %1273 = vmatpush1.msra.mxu0 0.0
        %1274 = vmatprep.subr.mxu0 0.0
        %1275 = vmatpush1.msra.mxu0 0.0
        %1276 = vmatprep.subr.mxu0 0.0
        %1277 = vmatpush1.msra.mxu0 0.0
        %1278 = vmatprep.subr.mxu0 0.0
        %1279 = vmatpush1.msra.mxu0 0.0
        %1280 = vmatprep.subr.mxu0 0.0
        %1281 = vmatpush1.msra.mxu0 0.0
        %1282 = vmatprep.subr.mxu0 0.0
        %1283 = vmatpush1.msra.mxu0 0.0
        %1284 = vmatprep.subr.mxu0 0.0
        %1285 = vmatpush1.msra.mxu0 0.0
        %1286 = vmatprep.subr.mxu0 0.0
        %1287 = vmatpush1.msra.mxu0 0.0
        %1288 = vmatprep.subr.mxu0 0.0
        %1289 = vmatpush1.msra.mxu0 0.0
        %1290 = vmatprep.subr.mxu0 0.0
        %1291 = vmatpush1.msra.mxu0 0.0
        %1292 = vmatprep.subr.mxu0 0.0
        %1293 = vmatpush1.msra.mxu0 0.0
        %1294 = vmatprep.subr.mxu0 0.0
        %1295 = vmatpush1.msra.mxu0 0.0
        %1296 = vmatprep.subr.mxu0 0.0
        %1297 = vmatpush1.msra.mxu0 0.0
        %1298 = vmatprep.subr.mxu0 0.0
        %1299 = vmatpush1.msra.mxu0 0.0
        %1300 = vmatprep.subr.mxu0 0.0
        %1301 = vmatpush1.msra.mxu0 0.0
        %1302 = vmatprep.subr.mxu0 0.0
        %1303 = vmatpush1.msra.mxu0 0.0
        %1304 = vmatprep.subr.mxu0 0.0
        %1305 = vmatpush1.msra.mxu0 0.0
        %1306 = vmatprep.subr.mxu0 0.0
        %1307 = vmatpush1.msra.mxu0 0.0
        %1308 = vmatprep.subr.mxu0 0.0
        %1309 = vmatpush1.msra.mxu0 0.0
        %1310 = vmatprep.subr.mxu0 0.0
        %1311 = vmatpush1.msra.mxu0 0.0
        %1312 = vmatprep.subr.mxu0 0.0
        %1313 = vmatpush1.msra.mxu0 0.0
        %1314 = vmatprep.mubr.f32.mxu0 0.0
        %1315 = vmatmul.mubr.f32.gmra.mrb[0].mxu0 %v1239
        %v1316 = vpop.f32.mrb[0].mxu0
        %v1317 = vadd.f32 %v1221, %v1316
        %v1318 = vpop.f32.mrb[0].mxu0
        %v1319 = vadd.f32 %v1221, %v1318
        %1320 = vmatprep.mubr.f32.mxu0 0.0
        %1321 = vmatmul.mubr.f32.gmra.mrb[0].mxu0 %v1242
        %v1322 = vpop.f32.mrb[0].mxu0
        %v1323 = vadd.f32 %v1226, %v1322
        %v1324 = vpop.f32.mrb[0].mxu0
        %v1325 = vadd.f32 %v1226, %v1324
        %1326 = vmatprep.mubr.f32.mxu0 0.0
        %1327 = vmatmul.mubr.f32.gmra.mrb[0].mxu0 %v1245
        %v1328 = vpop.f32.mrb[0].mxu0
        %v1329 = vadd.f32 %v1231, %v1328
        %v1330 = vpop.f32.mrb[0].mxu0
        %v1331 = vadd.f32 %v1231, %v1330
        %1332 = vmatprep.mubr.f32.mxu0 0.0
        %1333 = vmatmul.mubr.f32.gmra.mrb[0].mxu0 %v1248
        %v1334 = vpop.f32.mrb[0].mxu0
        %v1335 = vadd.f32 %v1236, %v1334
        %v1336 = vpop.f32.mrb[0].mxu0
        %v1337 = vadd.f32 %v1236, %v1336
        %1338 = vdwg.mxu0
        %1339 = vmatprep.subr.mxu0 %v1181
        %1340 = vmatpush1.msra.mxu0 %v1180
        %1341 = vmatprep.subr.mxu0 %v1189
        %1342 = vmatpush1.msra.mxu0 %v1188
        %1343 = vmatprep.subr.mxu0 %v1197
        %1344 = vmatpush1.msra.mxu0 %v1196
        %1345 = vmatprep.subr.mxu0 %v1205
        %1346 = vmatpush1.msra.mxu0 %v1204
        %1347 = vmatprep.subr.mxu0 0.0
        %1348 = vmatpush1.msra.mxu0 0.0
        %1349 = vmatprep.subr.mxu0 0.0
        %1350 = vmatpush1.msra.mxu0 0.0
        %1351 = vmatprep.subr.mxu0 0.0
        %1352 = vmatpush1.msra.mxu0 0.0
        %1353 = vmatprep.subr.mxu0 0.0
        %1354 = vmatpush1.msra.mxu0 0.0
        %1355 = vmatprep.subr.mxu0 0.0
        %1356 = vmatpush1.msra.mxu0 0.0
        %1357 = vmatprep.subr.mxu0 0.0
        %1358 = vmatpush1.msra.mxu0 0.0
        %1359 = vmatprep.subr.mxu0 0.0
        %1360 = vmatpush1.msra.mxu0 0.0
        %1361 = vmatprep.subr.mxu0 0.0
        %1362 = vmatpush1.msra.mxu0 0.0
        %1363 = vmatprep.subr.mxu0 0.0
        %1364 = vmatpush1.msra.mxu0 0.0
        %1365 = vmatprep.subr.mxu0 0.0
        %1366 = vmatpush1.msra.mxu0 0.0
        %1367 = vmatprep.subr.mxu0 0.0
        %1368 = vmatpush1.msra.mxu0 0.0
        %1369 = vmatprep.subr.mxu0 0.0
        %1370 = vmatpush1.msra.mxu0 0.0
        %1371 = vmatprep.subr.mxu0 0.0
        %1372 = vmatpush1.msra.mxu0 0.0
        %1373 = vmatprep.subr.mxu0 0.0
        %1374 = vmatpush1.msra.mxu0 0.0
        %1375 = vmatprep.subr.mxu0 0.0
        %1376 = vmatpush1.msra.mxu0 0.0
        %1377 = vmatprep.subr.mxu0 0.0
        %1378 = vmatpush1.msra.mxu0 0.0
        %1379 = vmatprep.subr.mxu0 0.0
        %1380 = vmatpush1.msra.mxu0 0.0
        %1381 = vmatprep.subr.mxu0 0.0
        %1382 = vmatpush1.msra.mxu0 0.0
        %1383 = vmatprep.subr.mxu0 0.0
        %1384 = vmatpush1.msra.mxu0 0.0
        %1385 = vmatprep.subr.mxu0 0.0
        %1386 = vmatpush1.msra.mxu0 0.0
        %1387 = vmatprep.subr.mxu0 0.0
        %1388 = vmatpush1.msra.mxu0 0.0
        %1389 = vmatprep.subr.mxu0 0.0
        %1390 = vmatpush1.msra.mxu0 0.0
        %1391 = vmatprep.subr.mxu0 0.0
        %1392 = vmatpush1.msra.mxu0 0.0
        %1393 = vmatprep.subr.mxu0 0.0
        %1394 = vmatpush1.msra.mxu0 0.0
        %1395 = vmatprep.subr.mxu0 0.0
        %1396 = vmatpush1.msra.mxu0 0.0
        %1397 = vmatprep.subr.mxu0 0.0
        %1398 = vmatpush1.msra.mxu0 0.0
        %1399 = vmatprep.subr.mxu0 0.0
        %1400 = vmatpush1.msra.mxu0 0.0
        %1401 = vmatprep.subr.mxu0 0.0
        %1402 = vmatpush1.msra.mxu0 0.0
        %1403 = vmatprep.mubr.f32.mxu0 0.0
        %1404 = vmatmul.mubr.f32.gmra.mrb[0].mxu0 %v1239
        %v1405 = vpop.f32.mrb[0].mxu0
        %v1406 = vadd.f32 %v1221, %v1405
        %v1407 = vpop.f32.mrb[0].mxu0
        %v1408 = vadd.f32 %v1221, %v1407
        %1409 = vmatprep.mubr.f32.mxu0 0.0
        %1410 = vmatmul.mubr.f32.gmra.mrb[0].mxu0 %v1242
        %v1411 = vpop.f32.mrb[0].mxu0
        %v1412 = vadd.f32 %v1226, %v1411
        %v1413 = vpop.f32.mrb[0].mxu0
        %v1414 = vadd.f32 %v1226, %v1413
        %1415 = vmatprep.mubr.f32.mxu0 0.0
        %1416 = vmatmul.mubr.f32.gmra.mrb[0].mxu0 %v1245
        %v1417 = vpop.f32.mrb[0].mxu0
        %v1418 = vadd.f32 %v1231, %v1417
        %v1419 = vpop.f32.mrb[0].mxu0
        %v1420 = vadd.f32 %v1231, %v1419
        %1421 = vmatprep.mubr.f32.mxu0 0.0
        %1422 = vmatmul.mubr.f32.gmra.mrb[0].mxu0 %v1248
        %v1423 = vpop.f32.mrb[0].mxu0
        %v1424 = vadd.f32 %v1236, %v1423
        %v1425 = vpop.f32.mrb[0].mxu0
        %v1426 = vadd.f32 %v1236, %v1425
        %1427 = vdwg.mxu0
        %1428 = vmatprep.subr.mxu0 %v1183
        %1429 = vmatpush1.msra.mxu0 %v1182
        %1430 = vmatprep.subr.mxu0 %v1191
        %1431 = vmatpush1.msra.mxu0 %v1190
        %1432 = vmatprep.subr.mxu0 %v1199
        %1433 = vmatpush1.msra.mxu0 %v1198
        %1434 = vmatprep.subr.mxu0 %v1207
        %1435 = vmatpush1.msra.mxu0 %v1206
        %1436 = vmatprep.subr.mxu0 0.0
        %1437 = vmatpush1.msra.mxu0 0.0
        %1438 = vmatprep.subr.mxu0 0.0
        %1439 = vmatpush1.msra.mxu0 0.0
        %1440 = vmatprep.subr.mxu0 0.0
        %1441 = vmatpush1.msra.mxu0 0.0
        %1442 = vmatprep.subr.mxu0 0.0
        %1443 = vmatpush1.msra.mxu0 0.0
        %1444 = vmatprep.subr.mxu0 0.0
        %1445 = vmatpush1.msra.mxu0 0.0
        %1446 = vmatprep.subr.mxu0 0.0
        %1447 = vmatpush1.msra.mxu0 0.0
        %1448 = vmatprep.subr.mxu0 0.0
        %1449 = vmatpush1.msra.mxu0 0.0
        %1450 = vmatprep.subr.mxu0 0.0
        %1451 = vmatpush1.msra.mxu0 0.0
        %1452 = vmatprep.subr.mxu0 0.0
        %1453 = vmatpush1.msra.mxu0 0.0
        %1454 = vmatprep.subr.mxu0 0.0
        %1455 = vmatpush1.msra.mxu0 0.0
        %1456 = vmatprep.subr.mxu0 0.0
        %1457 = vmatpush1.msra.mxu0 0.0
        %1458 = vmatprep.subr.mxu0 0.0
        %1459 = vmatpush1.msra.mxu0 0.0
        %1460 = vmatprep.subr.mxu0 0.0
        %1461 = vmatpush1.msra.mxu0 0.0
        %1462 = vmatprep.subr.mxu0 0.0
        %1463 = vmatpush1.msra.mxu0 0.0
        %1464 = vmatprep.subr.mxu0 0.0
        %1465 = vmatpush1.msra.mxu0 0.0
        %1466 = vmatprep.subr.mxu0 0.0
        %1467 = vmatpush1.msra.mxu0 0.0
        %1468 = vmatprep.subr.mxu0 0.0
        %1469 = vmatpush1.msra.mxu0 0.0
        %1470 = vmatprep.subr.mxu0 0.0
        %1471 = vmatpush1.msra.mxu0 0.0
        %1472 = vmatprep.subr.mxu0 0.0
        %1473 = vmatpush1.msra.mxu0 0.0
        %1474 = vmatprep.subr.mxu0 0.0
        %1475 = vmatpush1.msra.mxu0 0.0
        %1476 = vmatprep.subr.mxu0 0.0
        %1477 = vmatpush1.msra.mxu0 0.0
        %1478 = vmatprep.subr.mxu0 0.0
        %1479 = vmatpush1.msra.mxu0 0.0
        %1480 = vmatprep.subr.mxu0 0.0
        %1481 = vmatpush1.msra.mxu0 0.0
        %1482 = vmatprep.subr.mxu0 0.0
        %1483 = vmatpush1.msra.mxu0 0.0
        %1484 = vmatprep.subr.mxu0 0.0
        %1485 = vmatpush1.msra.mxu0 0.0
        %1486 = vmatprep.subr.mxu0 0.0
        %1487 = vmatpush1.msra.mxu0 0.0
        %1488 = vmatprep.subr.mxu0 0.0
        %1489 = vmatpush1.msra.mxu0 0.0
        %1490 = vmatprep.subr.mxu0 0.0
        %1491 = vmatpush1.msra.mxu0 0.0
        %1492 = vmatprep.mubr.f32.mxu0 0.0
        %1493 = vmatmul.mubr.f32.gmra.mrb[0].mxu0 %v1239
        %v1494 = vpop.f32.mrb[0].mxu0
        %v1495 = vadd.f32 %v1221, %v1494
        %v1496 = vpop.f32.mrb[0].mxu0
        %v1497 = vadd.f32 %v1221, %v1496
        %1498 = vmatprep.mubr.f32.mxu0 0.0
        %1499 = vmatmul.mubr.f32.gmra.mrb[0].mxu0 %v1242
        %v1500 = vpop.f32.mrb[0].mxu0
        %v1501 = vadd.f32 %v1226, %v1500
        %v1502 = vpop.f32.mrb[0].mxu0
        %v1503 = vadd.f32 %v1226, %v1502
        %1504 = vmatprep.mubr.f32.mxu0 0.0
        %1505 = vmatmul.mubr.f32.gmra.mrb[0].mxu0 %v1245
        %v1506 = vpop.f32.mrb[0].mxu0
        %v1507 = vadd.f32 %v1231, %v1506
        %v1508 = vpop.f32.mrb[0].mxu0
        %v1509 = vadd.f32 %v1231, %v1508
        %1510 = vmatprep.mubr.f32.mxu0 0.0
        %1511 = vmatmul.mubr.f32.gmra.mrb[0].mxu0 %v1248
        %v1512 = vpop.f32.mrb[0].mxu0
        %v1513 = vadd.f32 %v1236, %v1512
        %v1514 = vpop.f32.mrb[0].mxu0
        %v1515 = vadd.f32 %v1236, %v1514
        %1516 = vdwg.mxu0
        %1517 = vmatprep.subr.mxu0 %v1185
        %1518 = vmatpush1.msra.mxu0 %v1184
        %1519 = vmatprep.subr.mxu0 %v1193
        %1520 = vmatpush1.msra.mxu0 %v1192
        %1521 = vmatprep.subr.mxu0 %v1201
        %1522 = vmatpush1.msra.mxu0 %v1200
        %1523 = vmatprep.subr.mxu0 %v1209
        %1524 = vmatpush1.msra.mxu0 %v1208
        %1525 = vmatprep.subr.mxu0 0.0
        %1526 = vmatpush1.msra.mxu0 0.0
        %1527 = vmatprep.subr.mxu0 0.0
        %1528 = vmatpush1.msra.mxu0 0.0
        %1529 = vmatprep.subr.mxu0 0.0
        %1530 = vmatpush1.msra.mxu0 0.0
        %1531 = vmatprep.subr.mxu0 0.0
        %1532 = vmatpush1.msra.mxu0 0.0
        %1533 = vmatprep.subr.mxu0 0.0
        %1534 = vmatpush1.msra.mxu0 0.0
        %1535 = vmatprep.subr.mxu0 0.0
        %1536 = vmatpush1.msra.mxu0 0.0
        %1537 = vmatprep.subr.mxu0 0.0
        %1538 = vmatpush1.msra.mxu0 0.0
        %1539 = vmatprep.subr.mxu0 0.0
        %1540 = vmatpush1.msra.mxu0 0.0
        %1541 = vmatprep.subr.mxu0 0.0
        %1542 = vmatpush1.msra.mxu0 0.0
        %1543 = vmatprep.subr.mxu0 0.0
        %1544 = vmatpush1.msra.mxu0 0.0
        %1545 = vmatprep.subr.mxu0 0.0
        %1546 = vmatpush1.msra.mxu0 0.0
        %1547 = vmatprep.subr.mxu0 0.0
        %1548 = vmatpush1.msra.mxu0 0.0
        %1549 = vmatprep.subr.mxu0 0.0
        %1550 = vmatpush1.msra.mxu0 0.0
        %1551 = vmatprep.subr.mxu0 0.0
        %1552 = vmatpush1.msra.mxu0 0.0
        %1553 = vmatprep.subr.mxu0 0.0
        %1554 = vmatpush1.msra.mxu0 0.0
        %1555 = vmatprep.subr.mxu0 0.0
        %1556 = vmatpush1.msra.mxu0 0.0
        %1557 = vmatprep.subr.mxu0 0.0
        %1558 = vmatpush1.msra.mxu0 0.0
        %1559 = vmatprep.subr.mxu0 0.0
        %1560 = vmatpush1.msra.mxu0 0.0
        %1561 = vmatprep.subr.mxu0 0.0
        %1562 = vmatpush1.msra.mxu0 0.0
        %1563 = vmatprep.subr.mxu0 0.0
        %1564 = vmatpush1.msra.mxu0 0.0
        %1565 = vmatprep.subr.mxu0 0.0
        %1566 = vmatpush1.msra.mxu0 0.0
        %1567 = vmatprep.subr.mxu0 0.0
        %1568 = vmatpush1.msra.mxu0 0.0
        %1569 = vmatprep.subr.mxu0 0.0
        %1570 = vmatpush1.msra.mxu0 0.0
        %1571 = vmatprep.subr.mxu0 0.0
        %1572 = vmatpush1.msra.mxu0 0.0
        %1573 = vmatprep.subr.mxu0 0.0
        %1574 = vmatpush1.msra.mxu0 0.0
        %1575 = vmatprep.subr.mxu0 0.0
        %1576 = vmatpush1.msra.mxu0 0.0
        %1577 = vmatprep.subr.mxu0 0.0
        %1578 = vmatpush1.msra.mxu0 0.0
        %1579 = vmatprep.subr.mxu0 0.0
        %1580 = vmatpush1.msra.mxu0 0.0
        %1581 = vmatprep.mubr.f32.mxu0 0.0
        %1582 = vmatmul.mubr.f32.gmra.mrb[0].mxu0 %v1239
        %v1583 = vpop.f32.mrb[0].mxu0
        %v1584 = vadd.f32 %v1221, %v1583
        %v1585 = vpop.f32.mrb[0].mxu0
        %v1586 = vadd.f32 %v1221, %v1585
        %1587 = vmatprep.mubr.f32.mxu0 0.0
        %1588 = vmatmul.mubr.f32.gmra.mrb[0].mxu0 %v1242
        %v1589 = vpop.f32.mrb[0].mxu0
        %v1590 = vadd.f32 %v1226, %v1589
        %v1591 = vpop.f32.mrb[0].mxu0
        %v1592 = vadd.f32 %v1226, %v1591
        %1593 = vmatprep.mubr.f32.mxu0 0.0
        %1594 = vmatmul.mubr.f32.gmra.mrb[0].mxu0 %v1245
        %v1595 = vpop.f32.mrb[0].mxu0
        %v1596 = vadd.f32 %v1231, %v1595
        %v1597 = vpop.f32.mrb[0].mxu0
        %v1598 = vadd.f32 %v1231, %v1597
        %1599 = vmatprep.mubr.f32.mxu0 0.0
        %1600 = vmatmul.mubr.f32.gmra.mrb[0].mxu0 %v1248
        %v1601 = vpop.f32.mrb[0].mxu0
        %v1602 = vadd.f32 %v1236, %v1601
        %v1603 = vpop.f32.mrb[0].mxu0
        %v1604 = vadd.f32 %v1236, %v1603
        %1605 = vdwg.mxu0
        %v1606 = vtanh.pop %v1317
        %v1607 = vtanh.pop %v1319
        %v1608 = vtanh.pop %v1406
        %v1609 = vtanh.pop %v1408
        %v1610 = vtanh.pop %v1495
        %v1611 = vtanh.pop %v1497
        %v1612 = vtanh.pop %v1584
        %v1613 = vtanh.pop %v1586
        %v1614 = vtanh.pop %v1323
        %v1615 = vtanh.pop %v1325
        %v1616 = vtanh.pop %v1412
        %v1617 = vtanh.pop %v1414
        %v1618 = vtanh.pop %v1501
        %v1619 = vtanh.pop %v1503
        %v1620 = vtanh.pop %v1590
        %v1621 = vtanh.pop %v1592
        %v1622 = vtanh.pop %v1329
        %v1623 = vtanh.pop %v1331
        %v1624 = vtanh.pop %v1418
        %v1625 = vtanh.pop %v1420
        %v1626 = vtanh.pop %v1507
        %v1627 = vtanh.pop %v1509
        %v1628 = vtanh.pop %v1596
        %v1629 = vtanh.pop %v1598
        %v1630 = vtanh.pop %v1335
        %v1631 = vtanh.pop %v1337
        %v1632 = vtanh.pop %v1424
        %v1633 = vtanh.pop %v1426
        %v1634 = vtanh.pop %v1513
        %v1635 = vtanh.pop %v1515
        %v1636 = vtanh.pop %v1602
        %v1637 = vtanh.pop %v1604
        %v1638 = vld [vmem:[#allocation11] sm:$0xff]
        %v1639 = vld [vmem:[#allocation11 + $0x8] sm:$0xff]
        %v1640 = vld [vmem:[#allocation11 + $0x10] sm:$0xff]
        %v1641 = vld [vmem:[#allocation11 + $0x18] sm:$0xff]
        %v1642 = vld [vmem:[#allocation2] sm:$0x1]
        %1644 = vset.pattern.permute.xlu0 0
        %1645 = vperm.xlu0 %1644, %v1638
        %v1646 = vpop.permute.xlu0 %1645
        %1649 = vset.pattern.permute.xlu0 0
        %1650 = vperm.xlu0 %1649, %v1639
        %v1651 = vpop.permute.xlu0 %1650
        %1654 = vset.pattern.permute.xlu0 0
        %1655 = vperm.xlu0 %1654, %v1640
        %v1656 = vpop.permute.xlu0 %1655
        %1659 = vset.pattern.permute.xlu0 0
        %1660 = vperm.xlu0 %1659, %v1641
        %v1661 = vpop.permute.xlu0 %1660
        %v1663 = vmul.f32 %v1646, %v1606
        %v1664 = vmul.f32 %v1646, %v1607
        %v1665 = vmul.f32 %v1646, %v1608
        %v1666 = vmul.f32 %v1646, %v1609
        %v1667 = vmul.f32 %v1646, %v1610
        %v1668 = vmul.f32 %v1646, %v1611
        %v1669 = vmul.f32 %v1646, %v1612
        %v1670 = vmul.f32 %v1646, %v1613
        %v1671 = vmul.f32 %v1651, %v1614
        %v1672 = vmul.f32 %v1651, %v1615
        %v1673 = vmul.f32 %v1651, %v1616
        %v1674 = vmul.f32 %v1651, %v1617
        %v1675 = vmul.f32 %v1651, %v1618
        %v1676 = vmul.f32 %v1651, %v1619
        %v1677 = vmul.f32 %v1651, %v1620
        %v1678 = vmul.f32 %v1651, %v1621
        %v1679 = vmul.f32 %v1656, %v1622
        %v1680 = vmul.f32 %v1656, %v1623
        %v1681 = vmul.f32 %v1656, %v1624
        %v1682 = vmul.f32 %v1656, %v1625
        %v1683 = vmul.f32 %v1656, %v1626
        %v1684 = vmul.f32 %v1656, %v1627
        %v1685 = vmul.f32 %v1656, %v1628
        %v1686 = vmul.f32 %v1656, %v1629
        %v1687 = vmul.f32 %v1661, %v1630
        %v1688 = vmul.f32 %v1661, %v1631
        %v1689 = vmul.f32 %v1661, %v1632
        %v1690 = vmul.f32 %v1661, %v1633
        %v1691 = vmul.f32 %v1661, %v1634
        %v1692 = vmul.f32 %v1661, %v1635
        %v1693 = vmul.f32 %v1661, %v1636
        %v1694 = vmul.f32 %v1661, %v1637
        %v1695 = vadd.f32 %v1663, %v1671
        %v1696 = vadd.f32 %v1695, %v1679
        %v1697 = vadd.f32 %v1696, %v1687
        %v1698 = vrot.slane %v1697, 4
        %v1699 = vadd.f32 %v1697, %v1698
        %v1700 = vrot.slane %v1699, 2
        %v1701 = vadd.f32 %v1699, %v1700
        %v1702 = vrot.slane %v1701, 1
        %v1703 = vadd.f32 %v1701, %v1702
        %v1704 = vadd.f32 %v1664, %v1672
        %v1705 = vadd.f32 %v1704, %v1680
        %v1706 = vadd.f32 %v1705, %v1688
        %v1707 = vrot.slane %v1706, 4
        %v1708 = vadd.f32 %v1706, %v1707
        %v1709 = vrot.slane %v1708, 2
        %v1710 = vadd.f32 %v1708, %v1709
        %v1711 = vrot.slane %v1710, 1
        %v1712 = vadd.f32 %v1710, %v1711
        %v1713 = vadd.f32 %v1665, %v1673
        %v1714 = vadd.f32 %v1713, %v1681
        %v1715 = vadd.f32 %v1714, %v1689
        %v1716 = vrot.slane %v1715, 4
        %v1717 = vadd.f32 %v1715, %v1716
        %v1718 = vrot.slane %v1717, 2
        %v1719 = vadd.f32 %v1717, %v1718
        %v1720 = vrot.slane %v1719, 1
        %v1721 = vadd.f32 %v1719, %v1720
        %v1722 = vadd.f32 %v1666, %v1674
        %v1723 = vadd.f32 %v1722, %v1682
        %v1724 = vadd.f32 %v1723, %v1690
        %v1725 = vrot.slane %v1724, 4
        %v1726 = vadd.f32 %v1724, %v1725
        %v1727 = vrot.slane %v1726, 2
        %v1728 = vadd.f32 %v1726, %v1727
        %v1729 = vrot.slane %v1728, 1
        %v1730 = vadd.f32 %v1728, %v1729
        %v1731 = vadd.f32 %v1667, %v1675
        %v1732 = vadd.f32 %v1731, %v1683
        %v1733 = vadd.f32 %v1732, %v1691
        %v1734 = vrot.slane %v1733, 4
        %v1735 = vadd.f32 %v1733, %v1734
        %v1736 = vrot.slane %v1735, 2
        %v1737 = vadd.f32 %v1735, %v1736
        %v1738 = vrot.slane %v1737, 1
        %v1739 = vadd.f32 %v1737, %v1738
        %v1740 = vadd.f32 %v1668, %v1676
        %v1741 = vadd.f32 %v1740, %v1684
        %v1742 = vadd.f32 %v1741, %v1692
        %v1743 = vrot.slane %v1742, 4
        %v1744 = vadd.f32 %v1742, %v1743
        %v1745 = vrot.slane %v1744, 2
        %v1746 = vadd.f32 %v1744, %v1745
        %v1747 = vrot.slane %v1746, 1
        %v1748 = vadd.f32 %v1746, %v1747
        %v1749 = vadd.f32 %v1669, %v1677
        %v1750 = vadd.f32 %v1749, %v1685
        %v1751 = vadd.f32 %v1750, %v1693
        %v1752 = vrot.slane %v1751, 4
        %v1753 = vadd.f32 %v1751, %v1752
        %v1754 = vrot.slane %v1753, 2
        %v1755 = vadd.f32 %v1753, %v1754
        %v1756 = vrot.slane %v1755, 1
        %v1757 = vadd.f32 %v1755, %v1756
        %v1758 = vadd.f32 %v1670, %v1678
        %v1759 = vadd.f32 %v1758, %v1686
        %v1760 = vadd.f32 %v1759, %v1694
        %v1761 = vrot.slane %v1760, 4
        %v1762 = vadd.f32 %v1760, %v1761
        %v1763 = vrot.slane %v1762, 2
        %v1764 = vadd.f32 %v1762, %v1763
        %v1765 = vrot.slane %v1764, 1
        %v1766 = vadd.f32 %v1764, %v1765
        %1768 = vset.pattern.permute.xlu0 0
        %1769 = vperm.xlu0 %1768, %v1642
        %v1770 = vpop.permute.xlu0 %1769
        %v1772 = vlaneseq
        %v1773 = vshrl.u32 %v1772, 7
        %v1774 = vsub.s32 0, %v1773
        %v1775 = vrot.slane %v1770, %v1774
        %v1776 = vadd.f32 %v1703, %v1775
        %v1777 = vadd.f32 %v1712, %v1775
        %v1778 = vadd.f32 %v1721, %v1775
        %v1779 = vadd.f32 %v1730, %v1775
        %v1780 = vadd.f32 %v1739, %v1775
        %v1781 = vadd.f32 %v1748, %v1775
        %v1782 = vadd.f32 %v1757, %v1775
        %v1783 = vadd.f32 %v1766, %v1775
        %v1792 = vcombine.low %v1776, %v1777
        %v1793 = vcombine.low %v1778, %v1779
        %v1794 = vcombine.low %v1780, %v1781
        %v1795 = vcombine.low %v1782, %v1783
        %v1797 = vunpack.c.l.s4 1966171168
        %v1798 = vunpack.c.0.s8 %v1797
        %v1799 = vlaneseq
        %v1800 = vshrl.u32 %v1799, 7
        %v1801 = vsub.s32 %v1798, %v1800
        %v1802 = vrot.slane %v1792, %v1801
        %v1804 = vunpack.c.l.s4 1966171168
        %v1805 = vunpack.c.0.s8 %v1804
        %v1806 = vlaneseq
        %v1807 = vshrl.u32 %v1806, 7
        %v1808 = vsub.s32 %v1805, %v1807
        %v1809 = vrot.slane %v1793, %v1808
        %v1811 = vunpack.c.l.s4 1966171168
        %v1812 = vunpack.c.0.s8 %v1811
        %v1813 = vlaneseq
        %v1814 = vshrl.u32 %v1813, 7
        %v1815 = vsub.s32 %v1812, %v1814
        %v1816 = vrot.slane %v1794, %v1815
        %v1818 = vunpack.c.l.s4 1966171168
        %v1819 = vunpack.c.0.s8 %v1818
        %v1820 = vlaneseq
        %v1821 = vshrl.u32 %v1820, 7
        %v1822 = vsub.s32 %v1819, %v1821
        %v1823 = vrot.slane %v1795, %v1822
        %v1824 = vcombine.low %v1802, %v1809
        %v1825 = vcombine.low %v1816, %v1823
        %v1827 = vunpack.c.l.s4 1966171168
        %v1828 = vunpack.c.0.s8 %v1827
        %v1829 = vlaneseq
        %v1830 = vshrl.u32 %v1829, 7
        %v1831 = vsub.s32 %v1828, %v1830
        %v1832 = vrot.slane %v1824, %v1831
        %v1834 = vunpack.c.l.s4 1966171168
        %v1835 = vunpack.c.0.s8 %v1834
        %v1836 = vlaneseq
        %v1837 = vshrl.u32 %v1836, 7
        %v1838 = vsub.s32 %v1835, %v1837
        %v1839 = vrot.slane %v1825, %v1838
        %v1840 = vcombine.low %v1832, %v1839
        %1842 = vst [vmem:[%s401] sm:$0xff] %v1840
        %s1843 = sand.u32 %s230, 1
        %s1844 = scalar_lea.sflag [#allocation5], %s1843
        %s1845 = sand.u32 %s230, 1
        %s1846 = smul.addr %s1845, 8
        %s1847 = scalar_lea.vmem [#allocation12], %s1846
        // Predicated region
        $region77: #{_lambda_.1} parent=55 // pred_check
          %p1848 = pneg %p240
        $region78: #{_lambda_.1} parent=55 // pred_check_branch
          %1850 = sbr.rel (%p1848) target = $region80
        $region79: #{_lambda_.1} parent=55 // pred_region
          %s1851 = smul.u32 8, %s28
          %s1853 = ssub.s32 128, 128
          %1854 = vsyncadd %s1844, %s1853
          %s1855 = smul.addr %s1851, 16
          %s1856 = scalar_lea.hbm %s9, %s1855
          %s1858 = sshll.u32 %s1847, 4
          %s1859 = int_to_ptr.vmem [resolvable:$true] %s1858
          %1861 = dma.vmem_to_hbm [thread:$0]  %s1859, 128, %s1856, %s1844
        $region80: #{_lambda_.1} parent=55 // pred_fallthru
          _
      $region56: #{_lambda_.1} parent=5 // pred_fallthru
        _
      %p1862 = scmp.le.s32.totalorder 2, %s23
      // Predicated region
      $region81: #{_lambda_.1} parent=5 // pred_check
        %p1863 = pneg %p1862
      $region82: #{_lambda_.1} parent=5 // pred_check_branch
        %1865 = sbr.rel (%p1863) target = $region84
      $region83: #{_lambda_.1} parent=5 // pred_region
        %s1866 = ssub.s32 %s23, 2
        // Predicated region
        $region85: #{_lambda_.1} parent=83 // pred_check
          %p1867 = pneg %p246
        $region86: #{_lambda_.1} parent=83 // pred_check_branch
          %1869 = sbr.rel (%p1867) target = $region88
        $region87: #{_lambda_.1} parent=83 // pred_region
          %s1870 = sand.u32 %s231, 1
          %s1871 = scalar_lea.sflag [#allocation5], %s1870
          %s1872 = sand.u32 %s231, 1
          %s1873 = smul.addr %s1872, 8
          %s1874 = scalar_lea.vmem [#allocation12], %s1873
          %1875 = dma.done %s1871, 128
        $region88: #{_lambda_.1} parent=83 // pred_fallthru
          _
      $region84: #{_lambda_.1} parent=5 // pred_fallthru
        _
    $region6: #{_lambda_.1} parent=1 // loop_footer
      %s27 = sadd.s32 1, %s23
    $region7: #{_lambda_.1} parent=1 // loop_footer_branch
      %22 = sbr.rel target = $region3
    $region8: #{_lambda_.1} parent=1 // loop_exit
      _
    %1876 = vsyncpa [#allocation4], 1
    %s1877 = scalar_lea.sflag [#allocation4], 1
    %1878 = vsyncpa %s1877, 1
    %1879 = vsyncpa [#allocation7], 1
    %1880 = vsyncpa [#allocation10], 1
    %1881 = vsyncpa [#allocation5], 1
    %s1882 = scalar_lea.sflag [#allocation5], 1
    %1883 = vsyncpa %s1882, 1

</llo_original>
